<compile_context>
chip_gen: v7x
topology: tpu7x:2x2x1
jax: 0.10.0
libtpu: 0.0.40
codegen_flags: <defaults>
</compile_context>

<pallas_src>
import numpy as np
import jax
import jax.numpy as jnp
from jax.experimental import pallas as pl
from jax.experimental.pallas import tpu as pltpu


# ----------------------------------------------------------------------------
# Fused decoder kernel (one grid step == B_TILE batch elements)
# ----------------------------------------------------------------------------
def _make_decoder_kernel(n_extra):
    """n_extra = n_layers - 1 (hidden conv layers after the fc1-composed one)."""

    def kernel(*refs):
        if n_extra > 0:
            latent_ref, w0_ref, b0_ref, wl_ref, bl_ref, wf_ref, bf_ref, out_ref = refs
        else:
            latent_ref, w0_ref, b0_ref, wf_ref, bf_ref, out_ref = refs

        # fc1 + nearest-upsample + conv layer 0 are pre-composed host-side into
        # one (e, n_hidden*S1) matrix; single MXU matmul, bias + ReLU in f32.
        x = jnp.dot(latent_ref[...].astype(jnp.bfloat16), w0_ref[...],
                    preferred_element_type=jnp.float32)        # (B_TILE, nh*S1)
        x = jnp.maximum(x + b0_ref[...], 0.0)

        # Hidden conv layers 1..n_layers-1 (no upsample): one dense matmul each.
        for l in range(n_extra):
            x = jnp.dot(x.astype(jnp.bfloat16), wl_ref[l],
                        preferred_element_type=jnp.float32)    # (B_TILE, nh*S1)
            x = jnp.maximum(x + bl_ref[l], 0.0)

        # Final upsample + conv -> sigmoid, folded into one (nh*S1, c*S2) matmul.
        x = jnp.dot(x.astype(jnp.bfloat16), wf_ref[...],
                    preferred_element_type=jnp.float32)        # (B_TILE, c*S2)
        out_ref[...] = jax.nn.sigmoid(x + bf_ref[...])          # dense store

    return kernel


# ----------------------------------------------------------------------------
# Host-side constant construction (pure layout / index math, done once)
# ----------------------------------------------------------------------------
def _conv_dense_matrix(weight, h_in, w_in, up):
    """Fold nearest-upsample(x`up`) + 3x3 conv (pad=1, zero border) + channel
    mixing into one dense (I*S_in, O*S_out) matrix for the (B, C*S) row
    layout:  out[b, o*S_out+p] = sum_{i,q} x[b, i*S_in+q] * M[i*S_in+q, o*S_out+p]."""
    weight = np.asarray(weight, np.float32)          # (O, I, 3, 3)
    O, I = weight.shape[:2]
    h_out, w_out = h_in * up, w_in * up
    s_in, s_out = h_in * w_in, h_out * w_out

    # Per-tap 0/1 gather matrices (upsample + shift + zero-pad border mask).
    g = np.zeros((9, s_in, s_out), np.float32)
    so = np.arange(s_out)
    yo, xo = so // w_out, so % w_out
    for ky in range(3):
        for kx in range(3):
            ys, xs = yo + (ky - 1), xo + (kx - 1)
            valid = (ys >= 0) & (ys < h_out) & (xs >= 0) & (xs < w_out)
            src = (np.clip(ys, 0, h_out - 1) // up) * w_in + \
                  (np.clip(xs, 0, w_out - 1) // up)
            g[ky * 3 + kx, src[valid], so[valid]] = 1.0

    m = np.zeros((I * s_in, O * s_out), np.float32)
    for t in range(9):
        ky, kx = t // 3, t % 3
        m += np.kron(weight[:, :, ky, kx].T, g[t])   # (I*s_in, O*s_out)
    return m


def make_params(cfg, key):
    c, h, w, e = cfg["c"], cfg["h"], cfg["w"], cfg["e"]
    nh, nl = cfg["n_hidden"], cfg["n_layers"]
    f1_dim = nh * (w * h) // (4 * 4)
    keys = iter(jax.random.split(key, 4 + 2 * nl))
    init = lambda k, shape: 0.1 * jax.random.normal(k, shape, dtype=jnp.float32)
    return {
        "fc1_w": init(next(keys), (f1_dim, e)),      # torch Linear: (out, in)
        "fc1_b": init(next(keys), (f1_dim,)),
        "layers": [(init(next(keys), (nh, nh, 3, 3)), init(next(keys), (nh,)))
                   for _ in range(nl)],
        "conv2_w": init(next(keys), (c, nh, 3, 3)),
        "conv2_b": init(next(keys), (c,)),
    }


def prepare_decoder_operands(p, cfg):
    c, h, w = cfg["c"], cfg["h"], cfg["w"]
    s = cfg["s"]
    h4, w4 = h // 4, w // 4
    h2, w2 = h4 * s, w4 * s
    S1, S2 = h2 * w2, h * w

    # fc1 in row layout: (x @ fc_w + fc_b) gives (nh, h4, w4) flattened
    # channel-major, matching the module's reshape.
    fc_w = np.asarray(p["fc1_w"], np.float32).T                # (e, nh*S0)
    fc_b = np.asarray(p["fc1_b"], np.float32)                  # (nh*S0,)

    # Layer 0: upsample + conv folded to a dense matrix, then pre-composed with
    # fc1 (no nonlinearity between them).  Composition done in f32.
    w0_conv, b0_conv = p["layers"][0]
    m0 = _conv_dense_matrix(w0_conv, h4, w4, s)                # (nh*S0, nh*S1)
    w0 = fc_w @ m0                                             # (e, nh*S1)
    b0 = fc_b @ m0 + np.repeat(np.asarray(b0_conv, np.float32), S1)

    # Hidden layers 1..n_layers-1 (no upsample).
    wl, bl = [], []
    for (wc, bc) in p["layers"][1:]:
        wl.append(_conv_dense_matrix(wc, h2, w2, 1))           # (nh*S1, nh*S1)
        bl.append(np.repeat(np.asarray(bc, np.float32), S1))

    # Final conv (with its upsample folded in).
    mf = _conv_dense_matrix(p["conv2_w"], h2, w2, s)           # (nh*S1, c*S2)
    bf = np.repeat(np.asarray(p["conv2_b"], np.float32), S2)

    ops = {
        "w0": jnp.asarray(w0, jnp.bfloat16),
        "b0": jnp.asarray(b0, jnp.float32).reshape(1, -1),
        "wf": jnp.asarray(mf, jnp.bfloat16),
        "bf": jnp.asarray(bf, jnp.float32).reshape(1, -1),
    }
    if wl:
        ops["wl"] = jnp.asarray(np.stack(wl), jnp.bfloat16)             # (nl-1, nh*S1, nh*S1)
        ops["bl"] = jnp.asarray(np.stack(bl)[:, None, :], jnp.float32)  # (nl-1, 1, nh*S1)
    return ops


# ----------------------------------------------------------------------------
# Forward pass (single fused pallas_call, batch-tiled grid)
# ----------------------------------------------------------------------------
def frame_decoder_forward(latent, ops, cfg, b_tile=None):
    c, h, w, e = cfg["c"], cfg["h"], cfg["w"], cfg["e"]
    nh, nl, s = cfg["n_hidden"], cfg["n_layers"], cfg["s"]
    # The module only reconstructs (h, w) for s == 2 with >= 1 hidden layer.
    assert s == 2 and nl >= 1 and h % 4 == 0 and w % 4 == 0
    B = latent.shape[0]
    S1, S2 = (h // 2) * (w // 2), h * w
    n_extra = nl - 1

    if b_tile is None:
        # Fill MXU rows where the batch allows, but keep >= 2 grid steps so the
        # "parallel" grid axis can use both v7x TensorCores.
        b_tile = min(256, max(8, 8 * ((B // 2) // 8))) if B >= 16 else 8
    b_tile = max(8, 8 * ((b_tile + 7) // 8))        # sublane-aligned block rows
    n_steps = pl.cdiv(B, b_tile)
    B_pad = n_steps * b_tile

    lat = latent.astype(jnp.float32)
    if B_pad != B:
        lat = jnp.pad(lat, ((0, B_pad - B), (0, 0)))

    operands = [lat, ops["w0"], ops["b0"]]
    in_specs = [
        pl.BlockSpec((b_tile, e), lambda i: (i, 0)),          # latent tile
        pl.BlockSpec(ops["w0"].shape, lambda i: (0, 0)),      # constant operands
        pl.BlockSpec(ops["b0"].shape, lambda i: (0, 0)),
    ]
    if n_extra > 0:
        operands += [ops["wl"], ops["bl"]]
        in_specs += [
            pl.BlockSpec(ops["wl"].shape, lambda i: (0, 0, 0)),
            pl.BlockSpec(ops["bl"].shape, lambda i: (0, 0, 0)),
        ]
    operands += [ops["wf"], ops["bf"]]
    in_specs += [
        pl.BlockSpec(ops["wf"].shape, lambda i: (0, 0)),
        pl.BlockSpec(ops["bf"].shape, lambda i: (0, 0)),
    ]

    flops = 2 * B_pad * (e * nh * S1 + n_extra * (nh * S1) ** 2 + nh * S1 * c * S2)
    bytes_accessed = (2 * sum(int(ops[k].size) for k in ops if k.startswith("w"))
                      + 4 * (int(lat.size) + B_pad * c * S2
                             + sum(int(ops[k].size) for k in ops if k.startswith("b"))))

    out = pl.pallas_call(
        _make_decoder_kernel(n_extra),
        out_shape=jax.ShapeDtypeStruct((B_pad, c * S2), jnp.float32),
        grid=(n_steps,),
        in_specs=in_specs,
        out_specs=pl.BlockSpec((b_tile, c * S2), lambda i: (i, 0)),  # lane+sublane dense
        compiler_params=pltpu.CompilerParams(
            dimension_semantics=("parallel",),      # batch tiles shard across cores
            vmem_limit_bytes=32 * 1024 * 1024),
        cost_estimate=pl.CostEstimate(flops=int(flops),
                                      transcendentals=int(B_pad * c * S2),
                                      bytes_accessed=int(bytes_accessed)),
    )(*operands)

    # (B, c*h*w) row layout -> (B, c, h, w): contiguous reshape, no transpose.
    return out[:B].reshape(B, c, h, w)


# ----------------------------------------------------------------------------
# Pure-JAX reference (mirrors the PyTorch FrameDecoder.forward) for validation
# ----------------------------------------------------------------------------
def decoder_reference(p, latent, cfg):
    c, h, w = cfg["c"], cfg["h"], cfg["w"]
    nh, s = cfg["n_hidden"], cfg["s"]
    B = latent.shape[0]

    def conv(x, wt, bt):
        y = jax.lax.conv_general_dilated(
            x, wt, window_strides=(1, 1), padding=((1, 1), (1, 1)),
            dimension_numbers=("NCHW", "OIHW", "NCHW"))
        return y + bt[None, :, None, None]

    def up(x):
        return jnp.repeat(jnp.repeat(x, s, axis=2), s, axis=3)

    x = latent @ p["fc1_w"].T + p["fc1_b"]
    x = x.reshape(B, nh, h // 4, w // 4)
    for i, (wl, bl) in enumerate(p["layers"]):
        xin = up(x) if i < 1 else x
        x = jax.nn.relu(conv(xin, wl, bl))
    x = jax.nn.sigmoid(conv(up(x), p["conv2_w"], p["conv2_b"]))
    return x


# ----------------------------------------------------------------------------
if __name__ == "__main__":
    cfg = dict(c=4, h=16, w=16, e=32, n_hidden=8, n_layers=2, s=2)

    key = jax.random.PRNGKey(0)
    k_param, k_x = jax.random.split(key)

    params = make_params(cfg, k_param)
    ops = prepare_decoder_operands(params, cfg)

    B = 32
    latent = jax.random.normal(k_x, (B, cfg["e"]), dtype=jnp.float32)

    out = frame_decoder_forward(latent, ops, cfg)        # grid=(2,), B_TILE=16
    out = jax.block_until_ready(out)

    assert out.shape == (B, cfg["c"], cfg["h"], cfg["w"]), out.shape
    assert bool(jnp.all((out >= 0.0) & (out <= 1.0))), "sigmoid output out of range"

    ref = decoder_reference(params, latent, cfg)
    err = float(jnp.max(jnp.abs(out - ref)))
    assert err < 2e-2, f"kernel/reference mismatch: max abs err = {err}"

    print("KERNEL_OK")
</pallas_src>

<mosaic_0001>
module attributes {stable_mosaic.version = 11 : i64} {
  func.func @kernel(%arg0: i32, %arg1: memref<16x32xf32, #tpu.memory_space<vmem>>, %arg2: memref<32x512xbf16, #tpu.memory_space<vmem>>, %arg3: memref<1x512xf32, #tpu.memory_space<vmem>>, %arg4: memref<1x512x512xbf16, #tpu.memory_space<vmem>>, %arg5: memref<1x1x512xf32, #tpu.memory_space<vmem>>, %arg6: memref<512x1024xbf16, #tpu.memory_space<vmem>>, %arg7: memref<1x1024xf32, #tpu.memory_space<vmem>>, %arg8: memref<16x1024xf32, #tpu.memory_space<vmem>>) attributes {dimension_semantics = [#tpu.dimension_semantics<parallel>], iteration_bounds = array<i64: 2>, scalar_prefetch = 0 : i64, scratch_operands = 0 : i64, tpu.core_type = #tpu.core_type<tc>, window_params = [{transform_indices = @transform_0, window_bounds = array<i64: 16, 32>}, {pipeline_mode = #tpu.pipeline_mode<synchronous>, transform_indices = @transform_1, window_bounds = array<i64: 32, 512>}, {pipeline_mode = #tpu.pipeline_mode<synchronous>, transform_indices = @transform_2, window_bounds = array<i64: 1, 512>}, {pipeline_mode = #tpu.pipeline_mode<synchronous>, transform_indices = @transform_3, window_bounds = array<i64: 1, 512, 512>}, {pipeline_mode = #tpu.pipeline_mode<synchronous>, transform_indices = @transform_4, window_bounds = array<i64: 1, 1, 512>}, {pipeline_mode = #tpu.pipeline_mode<synchronous>, transform_indices = @transform_5, window_bounds = array<i64: 512, 1024>}, {pipeline_mode = #tpu.pipeline_mode<synchronous>, transform_indices = @transform_6, window_bounds = array<i64: 1, 1024>}, {transform_indices = @transform_7, window_bounds = array<i64: 16, 1024>}]} {
    %c0 = arith.constant 0 : index
    %c0_0 = arith.constant 0 : index
    %0 = vector.load %arg1[%c0, %c0_0] : memref<16x32xf32, #tpu.memory_space<vmem>>, vector<16x32xf32>
    %1 = arith.truncf %0 : vector<16x32xf32> to vector<16x32xbf16>
    %c0_1 = arith.constant 0 : index
    %c0_2 = arith.constant 0 : index
    %2 = vector.load %arg2[%c0_1, %c0_2] : memref<32x512xbf16, #tpu.memory_space<vmem>>, vector<32x512xbf16>
    %cst = arith.constant dense<0.000000e+00> : vector<16x512xf32>
    %3 = tpu.matmul %1, %2, %cst {dimension_numbers = #tpu.dot_dimension_numbers<[1], [0], [0], [1], [0, 0, 1, 1], [], []>} : vector<16x32xbf16>, vector<32x512xbf16>, vector<16x512xf32> -> vector<16x512xf32>
    %c0_3 = arith.constant 0 : index
    %c0_4 = arith.constant 0 : index
    %4 = vector.load %arg3[%c0_3, %c0_4] : memref<1x512xf32, #tpu.memory_space<vmem>>, vector<1x512xf32>
    %5 = vector.broadcast %4 : vector<1x512xf32> to vector<16x512xf32>
    %6 = arith.addf %3, %5 : vector<16x512xf32>
    %cst_5 = arith.constant 0.000000e+00 : f32
    %7 = vector.broadcast %cst_5 : f32 to vector<16x512xf32>
    %8 = arith.maximumf %6, %7 : vector<16x512xf32>
    %9 = arith.truncf %8 : vector<16x512xf32> to vector<16x512xbf16>
    %c0_6 = arith.constant 0 : index
    %c0_7 = arith.constant 0 : index
    %c0_8 = arith.constant 0 : index
    %10 = vector.load %arg4[%c0_6, %c0_7, %c0_8] : memref<1x512x512xbf16, #tpu.memory_space<vmem>>, vector<1x512x512xbf16>
    %11 = vector.shape_cast %10 : vector<1x512x512xbf16> to vector<512x512xbf16>
    %cst_9 = arith.constant dense<0.000000e+00> : vector<16x512xf32>
    %12 = tpu.matmul %9, %11, %cst_9 {dimension_numbers = #tpu.dot_dimension_numbers<[1], [0], [0], [1], [0, 0, 1, 1], [], []>} : vector<16x512xbf16>, vector<512x512xbf16>, vector<16x512xf32> -> vector<16x512xf32>
    %c0_10 = arith.constant 0 : index
    %c0_11 = arith.constant 0 : index
    %c0_12 = arith.constant 0 : index
    %13 = vector.load %arg5[%c0_10, %c0_11, %c0_12] : memref<1x1x512xf32, #tpu.memory_space<vmem>>, vector<1x1x512xf32>
    %14 = vector.shape_cast %13 : vector<1x1x512xf32> to vector<1x512xf32>
    %15 = vector.broadcast %14 : vector<1x512xf32> to vector<16x512xf32>
    %16 = arith.addf %12, %15 : vector<16x512xf32>
    %cst_13 = arith.constant 0.000000e+00 : f32
    %17 = vector.broadcast %cst_13 : f32 to vector<16x512xf32>
    %18 = arith.maximumf %16, %17 : vector<16x512xf32>
    %19 = arith.truncf %18 : vector<16x512xf32> to vector<16x512xbf16>
    %c0_14 = arith.constant 0 : index
    %c0_15 = arith.constant 0 : index
    %20 = vector.load %arg6[%c0_14, %c0_15] : memref<512x1024xbf16, #tpu.memory_space<vmem>>, vector<512x1024xbf16>
    %cst_16 = arith.constant dense<0.000000e+00> : vector<16x1024xf32>
    %21 = tpu.matmul %19, %20, %cst_16 {dimension_numbers = #tpu.dot_dimension_numbers<[1], [0], [0], [1], [0, 0, 1, 1], [], []>} : vector<16x512xbf16>, vector<512x1024xbf16>, vector<16x1024xf32> -> vector<16x1024xf32>
    %c0_17 = arith.constant 0 : index
    %c0_18 = arith.constant 0 : index
    %22 = vector.load %arg7[%c0_17, %c0_18] : memref<1x1024xf32, #tpu.memory_space<vmem>>, vector<1x1024xf32>
    %23 = vector.broadcast %22 : vector<1x1024xf32> to vector<16x1024xf32>
    %24 = arith.addf %21, %23 : vector<16x1024xf32>
    %25 = arith.negf %24 : vector<16x1024xf32>
    %26 = math.exp %25 : vector<16x1024xf32>
    %cst_19 = arith.constant 1.000000e+00 : f32
    %27 = vector.broadcast %cst_19 : f32 to vector<16x1024xf32>
    %28 = arith.addf %27, %26 : vector<16x1024xf32>
    %29 = arith.divf %27, %28 : vector<16x1024xf32>
    %c0_20 = arith.constant 0 : index
    %c0_21 = arith.constant 0 : index
    %30 = vector.load %arg8[%c0_20, %c0_21] : memref<16x1024xf32, #tpu.memory_space<vmem>>, vector<16x1024xf32>
    tpu.vector_store %arg8[%c0_20, %c0_21], %29 {strides = array<i32>} : memref<16x1024xf32, #tpu.memory_space<vmem>>, vector<16x1024xf32>,
    return
  }
  func.func @transform_0(%arg0: i32) -> (i32, i32) {
    %c0_i32 = arith.constant 0 : i32
    %c0_i32_0 = arith.constant 0 : i32
    return %arg0, %c0_i32 : i32, i32
  }
  func.func @transform_1(%arg0: i32) -> (i32, i32) {
    %c0_i32 = arith.constant 0 : i32
    %c0_i32_0 = arith.constant 0 : i32
    %c0_i32_1 = arith.constant 0 : i32
    return %c0_i32, %c0_i32_0 : i32, i32
  }
  func.func @transform_2(%arg0: i32) -> (i32, i32) {
    %c0_i32 = arith.constant 0 : i32
    %c0_i32_0 = arith.constant 0 : i32
    %c0_i32_1 = arith.constant 0 : i32
    return %c0_i32, %c0_i32_0 : i32, i32
  }
  func.func @transform_3(%arg0: i32) -> (i32, i32, i32) {
    %c0_i32 = arith.constant 0 : i32
    %c0_i32_0 = arith.constant 0 : i32
    %c0_i32_1 = arith.constant 0 : i32
    %c0_i32_2 = arith.constant 0 : i32
    return %c0_i32, %c0_i32_0, %c0_i32_1 : i32, i32, i32
  }
  func.func @transform_4(%arg0: i32) -> (i32, i32, i32) {
    %c0_i32 = arith.constant 0 : i32
    %c0_i32_0 = arith.constant 0 : i32
    %c0_i32_1 = arith.constant 0 : i32
    %c0_i32_2 = arith.constant 0 : i32
    return %c0_i32, %c0_i32_0, %c0_i32_1 : i32, i32, i32
  }
  func.func @transform_5(%arg0: i32) -> (i32, i32) {
    %c0_i32 = arith.constant 0 : i32
    %c0_i32_0 = arith.constant 0 : i32
    %c0_i32_1 = arith.constant 0 : i32
    return %c0_i32, %c0_i32_0 : i32, i32
  }
  func.func @transform_6(%arg0: i32) -> (i32, i32) {
    %c0_i32 = arith.constant 0 : i32
    %c0_i32_0 = arith.constant 0 : i32
    %c0_i32_1 = arith.constant 0 : i32
    return %c0_i32, %c0_i32_0 : i32, i32
  }
  func.func @transform_7(%arg0: i32) -> (i32, i32) {
    %c0_i32 = arith.constant 0 : i32
    %c0_i32_0 = arith.constant 0 : i32
    return %arg0, %c0_i32 : i32, i32
  }
}

</mosaic_0001>

<llo_original>
// kernel: tpu_custom_call.1
$region0: #{tpu_custom_call.1}
  #allocation0 [shape = 'u32[]', space=smem, size = 0x4, offset = 0x4, fixed_abs, tag = 'smem constant byte address 0x4 - core index']
  #allocation1 [shape = 'u32[144,128]{1,0:T(1,128)}', space=vmem, size = 0x12000, scoped, tag = 'internal scratch']
  %s0 = inlined_call_operand.hbm [shape: f32[32,32], index: 0, kind: input, shape index: {}]
  %s1 = inlined_call_operand.hbm [shape: bf16[32,512], index: 1, kind: input, shape index: {}]
  %s2 = inlined_call_operand.vmem [shape: f32[1,512], index: 2, kind: input, shape index: {}]
  %s3 = inlined_call_operand.hbm [shape: bf16[1,512,512], index: 3, kind: input, shape index: {}]
  %s4 = inlined_call_operand.hbm [shape: f32[1,1,512], index: 4, kind: input, shape index: {}]
  %s5 = inlined_call_operand.hbm [shape: bf16[512,1024], index: 5, kind: input, shape index: {}]
  %s6 = inlined_call_operand.vmem [shape: f32[1,1024], index: 6, kind: input, shape index: {}]
  %s7 = inlined_call_operand.hbm [shape: f32[32,1024], index: 7, kind: output, shape index: {}]
  %s8 = sld [smem:[#allocation0]]
  $region81: #{tpu_custom_call.1} parent=0
    _
  %s10 = ssub.s32 1, %s8
  %s11 = scalar_select 0, %s10, %s8
  $region1: #{tpu_custom_call.1} parent=0
    #allocation2 [shape = 'u8[16384]{0}', space=vmem, size = 0x4000, scoped, tag = 'input window, operand 0']
    #allocation3 [shape = 's32[2]{0}', space=sflag, size = 0x8, scoped, tag = 'scoped memory for tpu_custom_call.1']
    #allocation4 [shape = 's32[2]{0}', space=sflag, size = 0x8, scoped, tag = 'scoped memory for tpu_custom_call.1']
    #allocation5 [shape = 'u8[32768]{0}', space=vmem, size = 0x8000, scoped, tag = 'input window, operand 1, single buffered']
    #allocation6 [shape = 's32[1]{0}', space=sflag, size = 0x4, scoped, tag = 'scoped memory for tpu_custom_call.1']
    #allocation7 [shape = 'u8[524288]{0}', space=vmem, size = 0x80000, scoped, tag = 'input window, operand 3, single buffered']
    #allocation8 [shape = 'u8[2048]{0}', space=vmem, size = 0x800, scoped, tag = 'input window, operand 4, single buffered']
    #allocation9 [shape = 's32[1]{0}', space=sflag, size = 0x4, scoped, tag = 'scoped memory for tpu_custom_call.1']
    #allocation10 [shape = 'u8[1048576]{0}', space=vmem, size = 0x100000, scoped, tag = 'input window, operand 5, single buffered']
    #allocation11 [shape = 'u8[131072]{0}', space=vmem, size = 0x20000, scoped, tag = 'output window, operand 0']
    %12 = vsyncpa [#allocation3], 0
    %s13 = scalar_lea.sflag [#allocation3], 1
    %14 = vsyncpa %s13, 0
    %15 = vsyncpa [#allocation6], 0
    %16 = vsyncpa [#allocation9], 0
    %17 = vsyncpa [#allocation4], 0
    %s18 = scalar_lea.sflag [#allocation4], 1
    %19 = vsyncpa %s18, 0
    loop: start=0, step=1, limit=4
    $region2: #{tpu_custom_call.1} parent=1 // loop_pre_header
      _
    $region3: #{tpu_custom_call.1} parent=1 // loop_header
      %s21 = sphi 0, %s25
      %p22 = scmp.ge.s32.totalorder %s21, 4
      %s31 = sphi 0, %s33
      %s34 = sphi 0, %s31
      %s35 = sphi 0, %s34
      %s51 = sphi 0, %s35
      %s55 = sphi 0, %s55
      %s57 = sphi 0, %s55
      %s58 = sphi 0, %s57
      %s72 = sphi 0, %s58
      %s76 = sphi 0, %s76
      %s78 = sphi 0, %s76
      %s79 = sphi 0, %s78
      %s93 = sphi 0, %s79
      %s97 = sphi 0, %s97
      %s99 = sphi 0, %s97
      %s100 = sphi 0, %s99
      %s114 = sphi 0, %s100
      %s118 = sphi 0, %s118
      %s120 = sphi 0, %s118
      %s121 = sphi 0, %s120
      %s135 = sphi 0, %s121
      %s139 = sphi 0, %s139
      %s141 = sphi 0, %s139
      %s142 = sphi 0, %s141
      %s156 = sphi 0, %s142
      %s160 = sphi 0, %s160
      %s162 = sphi 0, %s160
      %s163 = sphi 0, %s162
      %s177 = sphi 0, %s163
      %s183 = sphi 0, %s185
      %s186 = sphi 0, %s183
      %s187 = sphi 0, %s186
      %s203 = sphi 0, %s187
    $region4: #{tpu_custom_call.1} parent=1 // loop_header_branch
      %24 = sbr.rel (%p22) target = $region8
    $region5: #{tpu_custom_call.1} parent=1 // loop_body
      %s26 = ssub.s32 %s21, 1
      %s27 = ssub.s32 %s21, 2
      %s28 = sadd.s32 %s21, 1
      %s29 = ssub.s32 %s21, %s28
      %p30 = scmp.eq.s32.totalorder %s29, 0
      %s32 = sadd.s32 %s31, 1
      %s33 = scalar_select %p30, %s31, %s32
      %p36 = pneg %p30
      %p37 = scmp.eq.s32.totalorder %s21, 1
      %p38 = por %p36, %p37
      %p39 = scmp.ne.s32.totalorder %s31, %s34
      %p40 = scmp.eq.s32.totalorder %s21, 0
      %p41 = por %p39, %p40
      %p42 = scmp.ne.s32.totalorder %s31, %s34
      %p43 = scmp.eq.s32.totalorder %s26, 1
      %p44 = por %p42, %p43
      %p45 = scmp.ne.s32.totalorder %s34, %s35
      %p46 = scmp.eq.s32.totalorder %s26, 0
      %p47 = por %p45, %p46
      %p48 = scmp.ne.s32.totalorder %s34, %s35
      %p49 = scmp.eq.s32.totalorder %s27, 1
      %p50 = por %p48, %p49
      %p52 = scmp.ne.s32.totalorder %s35, %s51
      %p53 = scmp.eq.s32.totalorder %s27, 0
      %p54 = por %p52, %p53
      %s56 = sadd.s32 %s55, 1
      %p59 = scmp.eq.s32.totalorder %s21, 1
      %p60 = scmp.ne.s32.totalorder %s55, %s57
      %p61 = scmp.eq.s32.totalorder %s21, 0
      %p62 = por %p60, %p61
      %p63 = scmp.ne.s32.totalorder %s55, %s57
      %p64 = scmp.eq.s32.totalorder %s26, 1
      %p65 = por %p63, %p64
      %p66 = scmp.ne.s32.totalorder %s57, %s58
      %p67 = scmp.eq.s32.totalorder %s26, 0
      %p68 = por %p66, %p67
      %p69 = scmp.ne.s32.totalorder %s57, %s58
      %p70 = scmp.eq.s32.totalorder %s27, 1
      %p71 = por %p69, %p70
      %p73 = scmp.ne.s32.totalorder %s58, %s72
      %p74 = scmp.eq.s32.totalorder %s27, 0
      %p75 = por %p73, %p74
      %s77 = sadd.s32 %s76, 1
      %p80 = scmp.eq.s32.totalorder %s21, 1
      %p81 = scmp.ne.s32.totalorder %s76, %s78
      %p82 = scmp.eq.s32.totalorder %s21, 0
      %p83 = por %p81, %p82
      %p84 = scmp.ne.s32.totalorder %s76, %s78
      %p85 = scmp.eq.s32.totalorder %s26, 1
      %p86 = por %p84, %p85
      %p87 = scmp.ne.s32.totalorder %s78, %s79
      %p88 = scmp.eq.s32.totalorder %s26, 0
      %p89 = por %p87, %p88
      %p90 = scmp.ne.s32.totalorder %s78, %s79
      %p91 = scmp.eq.s32.totalorder %s27, 1
      %p92 = por %p90, %p91
      %p94 = scmp.ne.s32.totalorder %s79, %s93
      %p95 = scmp.eq.s32.totalorder %s27, 0
      %p96 = por %p94, %p95
      %s98 = sadd.s32 %s97, 1
      %p101 = scmp.eq.s32.totalorder %s21, 1
      %p102 = scmp.ne.s32.totalorder %s97, %s99
      %p103 = scmp.eq.s32.totalorder %s21, 0
      %p104 = por %p102, %p103
      %p105 = scmp.ne.s32.totalorder %s97, %s99
      %p106 = scmp.eq.s32.totalorder %s26, 1
      %p107 = por %p105, %p106
      %p108 = scmp.ne.s32.totalorder %s99, %s100
      %p109 = scmp.eq.s32.totalorder %s26, 0
      %p110 = por %p108, %p109
      %p111 = scmp.ne.s32.totalorder %s99, %s100
      %p112 = scmp.eq.s32.totalorder %s27, 1
      %p113 = por %p111, %p112
      %p115 = scmp.ne.s32.totalorder %s100, %s114
      %p116 = scmp.eq.s32.totalorder %s27, 0
      %p117 = por %p115, %p116
      %s119 = sadd.s32 %s118, 1
      %p122 = scmp.eq.s32.totalorder %s21, 1
      %p123 = scmp.ne.s32.totalorder %s118, %s120
      %p124 = scmp.eq.s32.totalorder %s21, 0
      %p125 = por %p123, %p124
      %p126 = scmp.ne.s32.totalorder %s118, %s120
      %p127 = scmp.eq.s32.totalorder %s26, 1
      %p128 = por %p126, %p127
      %p129 = scmp.ne.s32.totalorder %s120, %s121
      %p130 = scmp.eq.s32.totalorder %s26, 0
      %p131 = por %p129, %p130
      %p132 = scmp.ne.s32.totalorder %s120, %s121
      %p133 = scmp.eq.s32.totalorder %s27, 1
      %p134 = por %p132, %p133
      %p136 = scmp.ne.s32.totalorder %s121, %s135
      %p137 = scmp.eq.s32.totalorder %s27, 0
      %p138 = por %p136, %p137
      %s140 = sadd.s32 %s139, 1
      %p143 = scmp.eq.s32.totalorder %s21, 1
      %p144 = scmp.ne.s32.totalorder %s139, %s141
      %p145 = scmp.eq.s32.totalorder %s21, 0
      %p146 = por %p144, %p145
      %p147 = scmp.ne.s32.totalorder %s139, %s141
      %p148 = scmp.eq.s32.totalorder %s26, 1
      %p149 = por %p147, %p148
      %p150 = scmp.ne.s32.totalorder %s141, %s142
      %p151 = scmp.eq.s32.totalorder %s26, 0
      %p152 = por %p150, %p151
      %p153 = scmp.ne.s32.totalorder %s141, %s142
      %p154 = scmp.eq.s32.totalorder %s27, 1
      %p155 = por %p153, %p154
      %p157 = scmp.ne.s32.totalorder %s142, %s156
      %p158 = scmp.eq.s32.totalorder %s27, 0
      %p159 = por %p157, %p158
      %s161 = sadd.s32 %s160, 1
      %p164 = scmp.eq.s32.totalorder %s21, 1
      %p165 = scmp.ne.s32.totalorder %s160, %s162
      %p166 = scmp.eq.s32.totalorder %s21, 0
      %p167 = por %p165, %p166
      %p168 = scmp.ne.s32.totalorder %s160, %s162
      %p169 = scmp.eq.s32.totalorder %s26, 1
      %p170 = por %p168, %p169
      %p171 = scmp.ne.s32.totalorder %s162, %s163
      %p172 = scmp.eq.s32.totalorder %s26, 0
      %p173 = por %p171, %p172
      %p174 = scmp.ne.s32.totalorder %s162, %s163
      %p175 = scmp.eq.s32.totalorder %s27, 1
      %p176 = por %p174, %p175
      %p178 = scmp.ne.s32.totalorder %s163, %s177
      %p179 = scmp.eq.s32.totalorder %s27, 0
      %p180 = por %p178, %p179
      %s181 = ssub.s32 %s21, %s28
      %p182 = scmp.eq.s32.totalorder %s181, 0
      %s184 = sadd.s32 %s183, 1
      %s185 = scalar_select %p182, %s183, %s184
      %p188 = pneg %p182
      %p189 = scmp.eq.s32.totalorder %s21, 1
      %p190 = por %p188, %p189
      %p191 = scmp.ne.s32.totalorder %s183, %s186
      %p192 = scmp.eq.s32.totalorder %s21, 0
      %p193 = por %p191, %p192
      %p194 = scmp.ne.s32.totalorder %s183, %s186
      %p195 = scmp.eq.s32.totalorder %s26, 1
      %p196 = por %p194, %p195
      %p197 = scmp.ne.s32.totalorder %s186, %s187
      %p198 = scmp.eq.s32.totalorder %s26, 0
      %p199 = por %p197, %p198
      %p200 = scmp.ne.s32.totalorder %s186, %s187
      %p201 = scmp.eq.s32.totalorder %s27, 1
      %p202 = por %p200, %p201
      %p204 = scmp.ne.s32.totalorder %s187, %s203
      %p205 = scmp.eq.s32.totalorder %s27, 0
      %p206 = por %p204, %p205
      %p207 = scmp.le.s32.totalorder 1, %s21
      %p208 = scmp.lt.s32.totalorder %s21, 3
      %p209 = pnand %p207, %p208
      %p210 = pneg %p209
      // Predicated region
      $region9: #{tpu_custom_call.1} parent=5 // pred_check
        _
      $region10: #{tpu_custom_call.1} parent=5 // pred_check_branch
        %212 = sbr.rel (%p209) target = $region12
      $region11: #{tpu_custom_call.1} parent=5 // pred_region
        %s213 = ssub.s32 %s21, 1
        // Predicated region
        $region13: #{tpu_custom_call.1} parent=11 // pred_check
          %p214 = pneg %p68
        $region14: #{tpu_custom_call.1} parent=11 // pred_check_branch
          %216 = sbr.rel (%p214) target = $region16
        $region15: #{tpu_custom_call.1} parent=11 // pred_region
          %s218 = ssub.s32 1024, 1024
          %219 = vsyncadd [#allocation6], %s218
          %s220 = sshll.u32 [#allocation5], 4
          %s221 = int_to_ptr.vmem [resolvable:$true] %s220
          %226 = dma.hbm_to_vmem [thread:$0]  %s1, 1024, %s221, [#allocation6], 256, 256, 16
        $region16: #{tpu_custom_call.1} parent=11 // pred_fallthru
          _
        // Predicated region
        $region17: #{tpu_custom_call.1} parent=11 // pred_check
          %p227 = pneg %p89
        $region18: #{tpu_custom_call.1} parent=11 // pred_check_branch
          %229 = sbr.rel (%p227) target = $region20
        $region19: #{tpu_custom_call.1} parent=11 // pred_region
          _
        $region20: #{tpu_custom_call.1} parent=11 // pred_fallthru
          _
        // Predicated region
        $region21: #{tpu_custom_call.1} parent=11 // pred_check
          %p230 = pneg %p110
        $region22: #{tpu_custom_call.1} parent=11 // pred_check_branch
          %232 = sbr.rel (%p230) target = $region24
        $region23: #{tpu_custom_call.1} parent=11 // pred_region
          %s234 = ssub.s32 16384, 16384
          %235 = vsyncadd [#allocation6], %s234
          %s236 = sshll.u32 [#allocation7], 4
          %s237 = int_to_ptr.vmem [resolvable:$true] %s236
          %242 = dma.hbm_to_vmem [thread:$0]  %s3, 16384, %s237, [#allocation6], 256, 256, 16
        $region24: #{tpu_custom_call.1} parent=11 // pred_fallthru
          _
        // Predicated region
        $region25: #{tpu_custom_call.1} parent=11 // pred_check
          %p243 = pneg %p131
        $region26: #{tpu_custom_call.1} parent=11 // pred_check_branch
          %245 = sbr.rel (%p243) target = $region28
        $region27: #{tpu_custom_call.1} parent=11 // pred_region
          %s247 = ssub.s32 64, 64
          %248 = vsyncadd [#allocation9], %s247
          %s250 = sshll.u32 [#allocation8], 4
          %s251 = int_to_ptr.vmem [resolvable:$true] %s250
          %253 = dma.hbm_to_vmem [thread:$0]  %s4, 64, %s251, [#allocation9]
        $region28: #{tpu_custom_call.1} parent=11 // pred_fallthru
          _
        // Predicated region
        $region29: #{tpu_custom_call.1} parent=11 // pred_check
          %p254 = pneg %p152
        $region30: #{tpu_custom_call.1} parent=11 // pred_check_branch
          %256 = sbr.rel (%p254) target = $region32
        $region31: #{tpu_custom_call.1} parent=11 // pred_region
          %s258 = ssub.s32 32768, 32768
          %259 = vsyncadd [#allocation9], %s258
          %s260 = sshll.u32 [#allocation10], 4
          %s261 = int_to_ptr.vmem [resolvable:$true] %s260
          %266 = dma.hbm_to_vmem [thread:$0]  %s5, 32768, %s261, [#allocation9], 512, 512, 32
        $region32: #{tpu_custom_call.1} parent=11 // pred_fallthru
          _
        // Predicated region
        $region33: #{tpu_custom_call.1} parent=11 // pred_check
          %p267 = pneg %p173
        $region34: #{tpu_custom_call.1} parent=11 // pred_check_branch
          %269 = sbr.rel (%p267) target = $region36
        $region35: #{tpu_custom_call.1} parent=11 // pred_region
          _
        $region36: #{tpu_custom_call.1} parent=11 // pred_fallthru
          _
      $region12: #{tpu_custom_call.1} parent=5 // pred_fallthru
        _
      %p270 = scmp.lt.s32.totalorder %s21, 2
      // Predicated region
      $region37: #{tpu_custom_call.1} parent=5 // pred_check
        %p271 = pneg %p270
      $region38: #{tpu_custom_call.1} parent=5 // pred_check_branch
        %273 = sbr.rel (%p271) target = $region40
      $region39: #{tpu_custom_call.1} parent=5 // pred_region
        // Predicated region
        $region41: #{tpu_custom_call.1} parent=39 // pred_check
          %p274 = pneg %p41
        $region42: #{tpu_custom_call.1} parent=39 // pred_check_branch
          %276 = sbr.rel (%p274) target = $region44
        $region43: #{tpu_custom_call.1} parent=39 // pred_region
          %s277 = sand.u32 %s31, 1
          %s278 = scalar_lea.sflag [#allocation3], %s277
          %s279 = sand.u32 %s31, 1
          %s280 = smul.addr %s279, 16
          %s281 = scalar_lea.vmem [#allocation2], %s280
          %s282 = smul.u32 2, %s21
          %s284 = ssub.s32 256, 256
          %285 = vsyncadd %s278, %s284
          %s286 = smul.addr %s282, 128
          %s287 = scalar_lea.hbm %s0, %s286
          %s288 = sshll.u32 %s281, 4
          %s289 = int_to_ptr.vmem [resolvable:$true] %s288
          %294 = dma.hbm_to_vmem [thread:$0]  %s287, 256, %s289, %s278, 128, 128, 8
        $region44: #{tpu_custom_call.1} parent=39 // pred_fallthru
          _
      $region40: #{tpu_custom_call.1} parent=5 // pred_fallthru
        _
      %p295 = scmp.le.s32.totalorder 1, %s21
      %p296 = scmp.lt.s32.totalorder %s21, 3
      %p297 = pnand %p295, %p296
      %p298 = pneg %p297
      // Predicated region
      $region45: #{tpu_custom_call.1} parent=5 // pred_check
        _
      $region46: #{tpu_custom_call.1} parent=5 // pred_check_branch
        %300 = sbr.rel (%p297) target = $region48
      $region47: #{tpu_custom_call.1} parent=5 // pred_region
        %s301 = ssub.s32 %s21, 1
        %s302 = sand.u32 %s34, 1
        %s303 = scalar_lea.sflag [#allocation3], %s302
        %s304 = sand.u32 %s34, 1
        %s305 = smul.addr %s304, 16
        %s306 = scalar_lea.vmem [#allocation2], %s305
        // Predicated region
        $region49: #{tpu_custom_call.1} parent=47 // pred_check
          %p307 = pneg %p47
        $region50: #{tpu_custom_call.1} parent=47 // pred_check_branch
          %309 = sbr.rel (%p307) target = $region52
        $region51: #{tpu_custom_call.1} parent=47 // pred_region
          %310 = dma.done %s303, 256
        $region52: #{tpu_custom_call.1} parent=47 // pred_fallthru
          _
        // Predicated region
        $region53: #{tpu_custom_call.1} parent=47 // pred_check
          %p311 = pneg %p68
        $region54: #{tpu_custom_call.1} parent=47 // pred_check_branch
          %313 = sbr.rel (%p311) target = $region56
        $region55: #{tpu_custom_call.1} parent=47 // pred_region
          %314 = dma.done [#allocation6], 1024
        $region56: #{tpu_custom_call.1} parent=47 // pred_fallthru
          _
        // Predicated region
        $region57: #{tpu_custom_call.1} parent=47 // pred_check
          %p315 = pneg %p110
        $region58: #{tpu_custom_call.1} parent=47 // pred_check_branch
          %317 = sbr.rel (%p315) target = $region60
        $region59: #{tpu_custom_call.1} parent=47 // pred_region
          %318 = dma.done [#allocation6], 16384
        $region60: #{tpu_custom_call.1} parent=47 // pred_fallthru
          _
        // Predicated region
        $region61: #{tpu_custom_call.1} parent=47 // pred_check
          %p319 = pneg %p131
        $region62: #{tpu_custom_call.1} parent=47 // pred_check_branch
          %321 = sbr.rel (%p319) target = $region64
        $region63: #{tpu_custom_call.1} parent=47 // pred_region
          %322 = dma.done [#allocation9], 64
        $region64: #{tpu_custom_call.1} parent=47 // pred_fallthru
          _
        // Predicated region
        $region65: #{tpu_custom_call.1} parent=47 // pred_check
          %p323 = pneg %p152
        $region66: #{tpu_custom_call.1} parent=47 // pred_check_branch
          %325 = sbr.rel (%p323) target = $region68
        $region67: #{tpu_custom_call.1} parent=47 // pred_region
          %326 = dma.done [#allocation9], 32768
        $region68: #{tpu_custom_call.1} parent=47 // pred_fallthru
          _
        %s327 = sand.u32 %s34, 1
        %s328 = scalar_lea.sflag [#allocation3], %s327
        %s329 = sand.u32 %s34, 1
        %s330 = smul.addr %s329, 16
        %s331 = scalar_lea.vmem [#allocation2], %s330
        %p332 = pneg %p47
        %p333 = pneg %p44
        %p334 = pneg %p68
        %p335 = pneg %p65
        %p336 = pneg %p89
        %p337 = pneg %p86
        %p338 = pneg %p110
        %p339 = pneg %p107
        %p340 = pneg %p131
        %p341 = pneg %p128
        %p342 = pneg %p152
        %p343 = pneg %p149
        %p344 = pneg %p173
        %p345 = pneg %p170
        %p346 = pneg %p199
        %p347 = pneg %p196
        %s348 = sand.u32 %s186, 1
        %s349 = scalar_lea.sflag [#allocation4], %s348
        %s350 = sand.u32 %s186, 1
        %s351 = smul.addr %s350, 128
        %s352 = scalar_lea.vmem [#allocation11], %s351
        %s353 = smul.u32 2, %s26
        %s354 = smul.u32 2, %s26
        %v356 = vld [vmem:[%s306] sm:$0xff]
        %v357 = vld [vmem:[%s306 + $0x8] sm:$0xff]
        %v358 = vpack.c.bf16 %v357, %v356
        %v359 = vld [vmem:[#allocation5] sm:$0xff]
        %v360 = vld [vmem:[#allocation5 + $0x8] sm:$0xff]
        %v361 = vld [vmem:[#allocation5 + $0x10] sm:$0xff]
        %v362 = vld [vmem:[#allocation5 + $0x18] sm:$0xff]
        %v363 = vld [vmem:[#allocation5 + $0x20] sm:$0xff]
        %v364 = vld [vmem:[#allocation5 + $0x28] sm:$0xff]
        %v365 = vld [vmem:[#allocation5 + $0x30] sm:$0xff]
        %v366 = vld [vmem:[#allocation5 + $0x38] sm:$0xff]
        %v367 = vld [vmem:[%s2] sm:$0xf]
        %v369 = vlaneseq
        %v370 = vshrl.u32 %v369, 7
        %v371 = vsub.s32 0, %v370
        %v372 = vrot.slane %v367, %v371
        %v373 = vlaneseq
        %v374 = vshrl.u32 %v373, 7
        %v375 = vsub.s32 1, %v374
        %v376 = vrot.slane %v367, %v375
        %v377 = vlaneseq
        %v378 = vshrl.u32 %v377, 7
        %v379 = vsub.s32 2, %v378
        %v380 = vrot.slane %v367, %v379
        %v381 = vlaneseq
        %v382 = vshrl.u32 %v381, 7
        %v383 = vsub.s32 3, %v382
        %v384 = vrot.slane %v367, %v383
        %v397 = vunpack.c.l.b16 %v359
        %v398 = vunpack.c.h.b16 %v359
        %v399 = vunpack.c.l.b16 %v360
        %v400 = vunpack.c.h.b16 %v360
        %v401 = vunpack.c.l.b16 %v361
        %v402 = vunpack.c.h.b16 %v361
        %v403 = vunpack.c.l.b16 %v362
        %v404 = vunpack.c.h.b16 %v362
        %v405 = vunpack.c.l.b16 %v363
        %v406 = vunpack.c.h.b16 %v363
        %v407 = vunpack.c.l.b16 %v364
        %v408 = vunpack.c.h.b16 %v364
        %v409 = vunpack.c.l.b16 %v365
        %v410 = vunpack.c.h.b16 %v365
        %v411 = vunpack.c.l.b16 %v366
        %v412 = vunpack.c.h.b16 %v366
        %v413 = vpack.c.b16 %v401, %v397
        %v414 = vpack.c.b16 %v402, %v398
        %v415 = vpack.c.b16 %v403, %v399
        %v416 = vpack.c.b16 %v404, %v400
        %v417 = vpack.c.b16 %v409, %v405
        %v418 = vpack.c.b16 %v410, %v406
        %v419 = vpack.c.b16 %v411, %v407
        %v420 = vpack.c.b16 %v412, %v408
        %vm429 = vcmask 261120
        %v431 = vsel %vm429, %v358, 0
        %433 = vmatprep.subr.bf16.mxu0 %v414
        %434 = vmatpush1.bf16.msra.mxu0 %v413
        %435 = vmatprep.subr.bf16.mxu0 %v418
        %436 = vmatpush1.bf16.msra.mxu0 %v417
        %437 = vmatprep.subr.bf16.mxu0 0
        %438 = vmatpush1.bf16.msra.mxu0 0
        %439 = vmatprep.subr.bf16.mxu0 0
        %440 = vmatpush1.bf16.msra.mxu0 0
        %441 = vmatprep.subr.bf16.mxu0 0
        %442 = vmatpush1.bf16.msra.mxu0 0
        %443 = vmatprep.subr.bf16.mxu0 0
        %444 = vmatpush1.bf16.msra.mxu0 0
        %445 = vmatprep.subr.bf16.mxu0 0
        %446 = vmatpush1.bf16.msra.mxu0 0
        %447 = vmatprep.subr.bf16.mxu0 0
        %448 = vmatpush1.bf16.msra.mxu0 0
        %449 = vmatprep.subr.bf16.mxu0 0
        %450 = vmatpush1.bf16.msra.mxu0 0
        %451 = vmatprep.subr.bf16.mxu0 0
        %452 = vmatpush1.bf16.msra.mxu0 0
        %453 = vmatprep.subr.bf16.mxu0 0
        %454 = vmatpush1.bf16.msra.mxu0 0
        %455 = vmatprep.subr.bf16.mxu0 0
        %456 = vmatpush1.bf16.msra.mxu0 0
        %457 = vmatprep.subr.bf16.mxu0 0
        %458 = vmatpush1.bf16.msra.mxu0 0
        %459 = vmatprep.subr.bf16.mxu0 0
        %460 = vmatpush1.bf16.msra.mxu0 0
        %461 = vmatprep.subr.bf16.mxu0 0
        %462 = vmatpush1.bf16.msra.mxu0 0
        %463 = vmatprep.subr.bf16.mxu0 0
        %464 = vmatpush1.bf16.msra.mxu0 0
        %465 = vmatprep.mubr.bf16.mxu0 0
        %466 = vmatmul.mubr.bf16.gmra.mrb[0].mxu0 %v431
        %v467 = vpop.f32.mrb[0].mxu0
        %v468 = vadd.f32 %v372, %v467
        %v469 = vpop.f32.mrb[0].mxu0
        %v470 = vadd.f32 %v376, %v469
        %v471 = vpop.f32.mrb[0].mxu0
        %v472 = vadd.f32 %v372, %v471
        %v473 = vpop.f32.mrb[0].mxu0
        %v474 = vadd.f32 %v376, %v473
        %475 = vdwg.mxu0
        %476 = vmatprep.subr.bf16.mxu0 %v416
        %477 = vmatpush1.bf16.msra.mxu0 %v415
        %478 = vmatprep.subr.bf16.mxu0 %v420
        %479 = vmatpush1.bf16.msra.mxu0 %v419
        %480 = vmatprep.subr.bf16.mxu0 0
        %481 = vmatpush1.bf16.msra.mxu0 0
        %482 = vmatprep.subr.bf16.mxu0 0
        %483 = vmatpush1.bf16.msra.mxu0 0
        %484 = vmatprep.subr.bf16.mxu0 0
        %485 = vmatpush1.bf16.msra.mxu0 0
        %486 = vmatprep.subr.bf16.mxu0 0
        %487 = vmatpush1.bf16.msra.mxu0 0
        %488 = vmatprep.subr.bf16.mxu0 0
        %489 = vmatpush1.bf16.msra.mxu0 0
        %490 = vmatprep.subr.bf16.mxu0 0
        %491 = vmatpush1.bf16.msra.mxu0 0
        %492 = vmatprep.subr.bf16.mxu0 0
        %493 = vmatpush1.bf16.msra.mxu0 0
        %494 = vmatprep.subr.bf16.mxu0 0
        %495 = vmatpush1.bf16.msra.mxu0 0
        %496 = vmatprep.subr.bf16.mxu0 0
        %497 = vmatpush1.bf16.msra.mxu0 0
        %498 = vmatprep.subr.bf16.mxu0 0
        %499 = vmatpush1.bf16.msra.mxu0 0
        %500 = vmatprep.subr.bf16.mxu0 0
        %501 = vmatpush1.bf16.msra.mxu0 0
        %502 = vmatprep.subr.bf16.mxu0 0
        %503 = vmatpush1.bf16.msra.mxu0 0
        %504 = vmatprep.subr.bf16.mxu0 0
        %505 = vmatpush1.bf16.msra.mxu0 0
        %506 = vmatprep.subr.bf16.mxu0 0
        %507 = vmatpush1.bf16.msra.mxu0 0
        %508 = vmatprep.mubr.bf16.mxu0 0
        %509 = vmatmul.mubr.bf16.gmra.mrb[0].mxu0 %v431
        %v510 = vpop.f32.mrb[0].mxu0
        %v511 = vadd.f32 %v380, %v510
        %v512 = vpop.f32.mrb[0].mxu0
        %v513 = vadd.f32 %v384, %v512
        %v514 = vpop.f32.mrb[0].mxu0
        %v515 = vadd.f32 %v380, %v514
        %v516 = vpop.f32.mrb[0].mxu0
        %v517 = vadd.f32 %v384, %v516
        %518 = vdwg.mxu0
        %v519 = vmax.f32 %v468, 0.0
        %v520 = vmax.f32 %v470, 0.0
        %v521 = vmax.f32 %v511, 0.0
        %v522 = vmax.f32 %v513, 0.0
        %v523 = vmax.f32 %v472, 0.0
        %v524 = vmax.f32 %v474, 0.0
        %v525 = vmax.f32 %v515, 0.0
        %v526 = vmax.f32 %v517, 0.0
        %v527 = vpack.c.bf16 %v523, %v519
        %v528 = vpack.c.bf16 %v524, %v520
        %v529 = vpack.c.bf16 %v525, %v521
        %v530 = vpack.c.bf16 %v526, %v522
        %v531 = vld [vmem:[#allocation7] sm:$0xff]
        %v532 = vld [vmem:[#allocation7 + $0x8] sm:$0xff]
        %v533 = vld [vmem:[#allocation7 + $0x10] sm:$0xff]
        %v534 = vld [vmem:[#allocation7 + $0x18] sm:$0xff]
        %v535 = vld [vmem:[#allocation7 + $0x20] sm:$0xff]
        %v536 = vld [vmem:[#allocation7 + $0x28] sm:$0xff]
        %v537 = vld [vmem:[#allocation7 + $0x30] sm:$0xff]
        %v538 = vld [vmem:[#allocation7 + $0x38] sm:$0xff]
        %v539 = vld [vmem:[#allocation7 + $0x40] sm:$0xff]
        %v540 = vld [vmem:[#allocation7 + $0x48] sm:$0xff]
        %v541 = vld [vmem:[#allocation7 + $0x50] sm:$0xff]
        %v542 = vld [vmem:[#allocation7 + $0x58] sm:$0xff]
        %v543 = vld [vmem:[#allocation7 + $0x60] sm:$0xff]
        %v544 = vld [vmem:[#allocation7 + $0x68] sm:$0xff]
        %v545 = vld [vmem:[#allocation7 + $0x70] sm:$0xff]
        %v546 = vld [vmem:[#allocation7 + $0x78] sm:$0xff]
        %v547 = vld [vmem:[#allocation7 + $0x80] sm:$0xff]
        %v548 = vld [vmem:[#allocation7 + $0x88] sm:$0xff]
        %v549 = vld [vmem:[#allocation7 + $0x90] sm:$0xff]
        %v550 = vld [vmem:[#allocation7 + $0x98] sm:$0xff]
        %v551 = vld [vmem:[#allocation7 + $0xa0] sm:$0xff]
        %v552 = vld [vmem:[#allocation7 + $0xa8] sm:$0xff]
        %v553 = vld [vmem:[#allocation7 + $0xb0] sm:$0xff]
        %v554 = vld [vmem:[#allocation7 + $0xb8] sm:$0xff]
        %v555 = vld [vmem:[#allocation7 + $0xc0] sm:$0xff]
        %v556 = vld [vmem:[#allocation7 + $0xc8] sm:$0xff]
        %v557 = vld [vmem:[#allocation7 + $0xd0] sm:$0xff]
        %v558 = vld [vmem:[#allocation7 + $0xd8] sm:$0xff]
        %v559 = vld [vmem:[#allocation7 + $0xe0] sm:$0xff]
        %v560 = vld [vmem:[#allocation7 + $0xe8] sm:$0xff]
        %v561 = vld [vmem:[#allocation7 + $0xf0] sm:$0xff]
        %v562 = vld [vmem:[#allocation7 + $0xf8] sm:$0xff]
        %v563 = vld [vmem:[#allocation7 + $0x100] sm:$0xff]
        %v564 = vld [vmem:[#allocation7 + $0x108] sm:$0xff]
        %v565 = vld [vmem:[#allocation7 + $0x110] sm:$0xff]
        %v566 = vld [vmem:[#allocation7 + $0x118] sm:$0xff]
        %v567 = vld [vmem:[#allocation7 + $0x120] sm:$0xff]
        %v568 = vld [vmem:[#allocation7 + $0x128] sm:$0xff]
        %v569 = vld [vmem:[#allocation7 + $0x130] sm:$0xff]
        %v570 = vld [vmem:[#allocation7 + $0x138] sm:$0xff]
        %v571 = vld [vmem:[#allocation7 + $0x140] sm:$0xff]
        %v572 = vld [vmem:[#allocation7 + $0x148] sm:$0xff]
        %v573 = vld [vmem:[#allocation7 + $0x150] sm:$0xff]
        %v574 = vld [vmem:[#allocation7 + $0x158] sm:$0xff]
        %v575 = vld [vmem:[#allocation7 + $0x160] sm:$0xff]
        %v576 = vld [vmem:[#allocation7 + $0x168] sm:$0xff]
        %v577 = vld [vmem:[#allocation7 + $0x170] sm:$0xff]
        %v578 = vld [vmem:[#allocation7 + $0x178] sm:$0xff]
        %v579 = vld [vmem:[#allocation7 + $0x180] sm:$0xff]
        %v580 = vld [vmem:[#allocation7 + $0x188] sm:$0xff]
        %v581 = vld [vmem:[#allocation7 + $0x190] sm:$0xff]
        %v582 = vld [vmem:[#allocation7 + $0x198] sm:$0xff]
        %v583 = vld [vmem:[#allocation7 + $0x1a0] sm:$0xff]
        %v584 = vld [vmem:[#allocation7 + $0x1a8] sm:$0xff]
        %v585 = vld [vmem:[#allocation7 + $0x1b0] sm:$0xff]
        %v586 = vld [vmem:[#allocation7 + $0x1b8] sm:$0xff]
        %v587 = vld [vmem:[#allocation7 + $0x1c0] sm:$0xff]
        %v588 = vld [vmem:[#allocation7 + $0x1c8] sm:$0xff]
        %v589 = vld [vmem:[#allocation7 + $0x1d0] sm:$0xff]
        %v590 = vld [vmem:[#allocation7 + $0x1d8] sm:$0xff]
        %v591 = vld [vmem:[#allocation7 + $0x1e0] sm:$0xff]
        %v592 = vld [vmem:[#allocation7 + $0x1e8] sm:$0xff]
        %v593 = vld [vmem:[#allocation7 + $0x1f0] sm:$0xff]
        %v594 = vld [vmem:[#allocation7 + $0x1f8] sm:$0xff]
        %v595 = vld [vmem:[#allocation7 + $0x200] sm:$0xff]
        %v596 = vld [vmem:[#allocation7 + $0x208] sm:$0xff]
        %v597 = vld [vmem:[#allocation7 + $0x210] sm:$0xff]
        %v598 = vld [vmem:[#allocation7 + $0x218] sm:$0xff]
        %v599 = vld [vmem:[#allocation7 + $0x220] sm:$0xff]
        %v600 = vld [vmem:[#allocation7 + $0x228] sm:$0xff]
        %v601 = vld [vmem:[#allocation7 + $0x230] sm:$0xff]
        %v602 = vld [vmem:[#allocation7 + $0x238] sm:$0xff]
        %v603 = vld [vmem:[#allocation7 + $0x240] sm:$0xff]
        %v604 = vld [vmem:[#allocation7 + $0x248] sm:$0xff]
        %v605 = vld [vmem:[#allocation7 + $0x250] sm:$0xff]
        %v606 = vld [vmem:[#allocation7 + $0x258] sm:$0xff]
        %v607 = vld [vmem:[#allocation7 + $0x260] sm:$0xff]
        %v608 = vld [vmem:[#allocation7 + $0x268] sm:$0xff]
        %v609 = vld [vmem:[#allocation7 + $0x270] sm:$0xff]
        %v610 = vld [vmem:[#allocation7 + $0x278] sm:$0xff]
        %v611 = vld [vmem:[#allocation7 + $0x280] sm:$0xff]
        %v612 = vld [vmem:[#allocation7 + $0x288] sm:$0xff]
        %v613 = vld [vmem:[#allocation7 + $0x290] sm:$0xff]
        %v614 = vld [vmem:[#allocation7 + $0x298] sm:$0xff]
        %v615 = vld [vmem:[#allocation7 + $0x2a0] sm:$0xff]
        %v616 = vld [vmem:[#allocation7 + $0x2a8] sm:$0xff]
        %v617 = vld [vmem:[#allocation7 + $0x2b0] sm:$0xff]
        %v618 = vld [vmem:[#allocation7 + $0x2b8] sm:$0xff]
        %v619 = vld [vmem:[#allocation7 + $0x2c0] sm:$0xff]
        %v620 = vld [vmem:[#allocation7 + $0x2c8] sm:$0xff]
        %v621 = vld [vmem:[#allocation7 + $0x2d0] sm:$0xff]
        %v622 = vld [vmem:[#allocation7 + $0x2d8] sm:$0xff]
        %v623 = vld [vmem:[#allocation7 + $0x2e0] sm:$0xff]
        %v624 = vld [vmem:[#allocation7 + $0x2e8] sm:$0xff]
        %v625 = vld [vmem:[#allocation7 + $0x2f0] sm:$0xff]
        %v626 = vld [vmem:[#allocation7 + $0x2f8] sm:$0xff]
        %v627 = vld [vmem:[#allocation7 + $0x300] sm:$0xff]
        %v628 = vld [vmem:[#allocation7 + $0x308] sm:$0xff]
        %v629 = vld [vmem:[#allocation7 + $0x310] sm:$0xff]
        %v630 = vld [vmem:[#allocation7 + $0x318] sm:$0xff]
        %v631 = vld [vmem:[#allocation7 + $0x320] sm:$0xff]
        %v632 = vld [vmem:[#allocation7 + $0x328] sm:$0xff]
        %v633 = vld [vmem:[#allocation7 + $0x330] sm:$0xff]
        %v634 = vld [vmem:[#allocation7 + $0x338] sm:$0xff]
        %v635 = vld [vmem:[#allocation7 + $0x340] sm:$0xff]
        %v636 = vld [vmem:[#allocation7 + $0x348] sm:$0xff]
        %v637 = vld [vmem:[#allocation7 + $0x350] sm:$0xff]
        %v638 = vld [vmem:[#allocation7 + $0x358] sm:$0xff]
        %v639 = vld [vmem:[#allocation7 + $0x360] sm:$0xff]
        %v640 = vld [vmem:[#allocation7 + $0x368] sm:$0xff]
        %v641 = vld [vmem:[#allocation7 + $0x370] sm:$0xff]
        %v642 = vld [vmem:[#allocation7 + $0x378] sm:$0xff]
        %v643 = vld [vmem:[#allocation7 + $0x380] sm:$0xff]
        %v644 = vld [vmem:[#allocation7 + $0x388] sm:$0xff]
        %v645 = vld [vmem:[#allocation7 + $0x390] sm:$0xff]
        %v646 = vld [vmem:[#allocation7 + $0x398] sm:$0xff]
        %v647 = vld [vmem:[#allocation7 + $0x3a0] sm:$0xff]
        %v648 = vld [vmem:[#allocation7 + $0x3a8] sm:$0xff]
        %v649 = vld [vmem:[#allocation7 + $0x3b0] sm:$0xff]
        %v650 = vld [vmem:[#allocation7 + $0x3b8] sm:$0xff]
        %v651 = vld [vmem:[#allocation7 + $0x3c0] sm:$0xff]
        %v652 = vld [vmem:[#allocation7 + $0x3c8] sm:$0xff]
        %v653 = vld [vmem:[#allocation7 + $0x3d0] sm:$0xff]
        %v654 = vld [vmem:[#allocation7 + $0x3d8] sm:$0xff]
        %v655 = vld [vmem:[#allocation7 + $0x3e0] sm:$0xff]
        %v656 = vld [vmem:[#allocation7 + $0x3e8] sm:$0xff]
        %v657 = vld [vmem:[#allocation7 + $0x3f0] sm:$0xff]
        %v658 = vld [vmem:[#allocation7 + $0x3f8] sm:$0xff]
        %v659 = vld [vmem:[#allocation8] sm:$0xf]
        %v661 = vlaneseq
        %v662 = vshrl.u32 %v661, 7
        %v663 = vsub.s32 0, %v662
        %v664 = vrot.slane %v659, %v663
        %v665 = vlaneseq
        %v666 = vshrl.u32 %v665, 7
        %v667 = vsub.s32 1, %v666
        %v668 = vrot.slane %v659, %v667
        %v669 = vlaneseq
        %v670 = vshrl.u32 %v669, 7
        %v671 = vsub.s32 2, %v670
        %v672 = vrot.slane %v659, %v671
        %v673 = vlaneseq
        %v674 = vshrl.u32 %v673, 7
        %v675 = vsub.s32 3, %v674
        %v676 = vrot.slane %v659, %v675
        %v809 = vunpack.c.l.b16 %v531
        %v810 = vunpack.c.h.b16 %v531
        %v811 = vunpack.c.l.b16 %v532
        %v812 = vunpack.c.h.b16 %v532
        %v813 = vunpack.c.l.b16 %v533
        %v814 = vunpack.c.h.b16 %v533
        %v815 = vunpack.c.l.b16 %v534
        %v816 = vunpack.c.h.b16 %v534
        %v817 = vunpack.c.l.b16 %v535
        %v818 = vunpack.c.h.b16 %v535
        %v819 = vunpack.c.l.b16 %v536
        %v820 = vunpack.c.h.b16 %v536
        %v821 = vunpack.c.l.b16 %v537
        %v822 = vunpack.c.h.b16 %v537
        %v823 = vunpack.c.l.b16 %v538
        %v824 = vunpack.c.h.b16 %v538
        %v825 = vunpack.c.l.b16 %v539
        %v826 = vunpack.c.h.b16 %v539
        %v827 = vunpack.c.l.b16 %v540
        %v828 = vunpack.c.h.b16 %v540
        %v829 = vunpack.c.l.b16 %v541
        %v830 = vunpack.c.h.b16 %v541
        %v831 = vunpack.c.l.b16 %v542
        %v832 = vunpack.c.h.b16 %v542
        %v833 = vunpack.c.l.b16 %v543
        %v834 = vunpack.c.h.b16 %v543
        %v835 = vunpack.c.l.b16 %v544
        %v836 = vunpack.c.h.b16 %v544
        %v837 = vunpack.c.l.b16 %v545
        %v838 = vunpack.c.h.b16 %v545
        %v839 = vunpack.c.l.b16 %v546
        %v840 = vunpack.c.h.b16 %v546
        %v841 = vunpack.c.l.b16 %v547
        %v842 = vunpack.c.h.b16 %v547
        %v843 = vunpack.c.l.b16 %v548
        %v844 = vunpack.c.h.b16 %v548
        %v845 = vunpack.c.l.b16 %v549
        %v846 = vunpack.c.h.b16 %v549
        %v847 = vunpack.c.l.b16 %v550
        %v848 = vunpack.c.h.b16 %v550
        %v849 = vunpack.c.l.b16 %v551
        %v850 = vunpack.c.h.b16 %v551
        %v851 = vunpack.c.l.b16 %v552
        %v852 = vunpack.c.h.b16 %v552
        %v853 = vunpack.c.l.b16 %v553
        %v854 = vunpack.c.h.b16 %v553
        %v855 = vunpack.c.l.b16 %v554
        %v856 = vunpack.c.h.b16 %v554
        %v857 = vunpack.c.l.b16 %v555
        %v858 = vunpack.c.h.b16 %v555
        %v859 = vunpack.c.l.b16 %v556
        %v860 = vunpack.c.h.b16 %v556
        %v861 = vunpack.c.l.b16 %v557
        %v862 = vunpack.c.h.b16 %v557
        %v863 = vunpack.c.l.b16 %v558
        %v864 = vunpack.c.h.b16 %v558
        %v865 = vunpack.c.l.b16 %v559
        %v866 = vunpack.c.h.b16 %v559
        %v867 = vunpack.c.l.b16 %v560
        %v868 = vunpack.c.h.b16 %v560
        %v869 = vunpack.c.l.b16 %v561
        %v870 = vunpack.c.h.b16 %v561
        %v871 = vunpack.c.l.b16 %v562
        %v872 = vunpack.c.h.b16 %v562
        %v873 = vunpack.c.l.b16 %v563
        %v874 = vunpack.c.h.b16 %v563
        %v875 = vunpack.c.l.b16 %v564
        %v876 = vunpack.c.h.b16 %v564
        %v877 = vunpack.c.l.b16 %v565
        %v878 = vunpack.c.h.b16 %v565
        %v879 = vunpack.c.l.b16 %v566
        %v880 = vunpack.c.h.b16 %v566
        %v881 = vunpack.c.l.b16 %v567
        %v882 = vunpack.c.h.b16 %v567
        %v883 = vunpack.c.l.b16 %v568
        %v884 = vunpack.c.h.b16 %v568
        %v885 = vunpack.c.l.b16 %v569
        %v886 = vunpack.c.h.b16 %v569
        %v887 = vunpack.c.l.b16 %v570
        %v888 = vunpack.c.h.b16 %v570
        %v889 = vunpack.c.l.b16 %v571
        %v890 = vunpack.c.h.b16 %v571
        %v891 = vunpack.c.l.b16 %v572
        %v892 = vunpack.c.h.b16 %v572
        %v893 = vunpack.c.l.b16 %v573
        %v894 = vunpack.c.h.b16 %v573
        %v895 = vunpack.c.l.b16 %v574
        %v896 = vunpack.c.h.b16 %v574
        %v897 = vunpack.c.l.b16 %v575
        %v898 = vunpack.c.h.b16 %v575
        %v899 = vunpack.c.l.b16 %v576
        %v900 = vunpack.c.h.b16 %v576
        %v901 = vunpack.c.l.b16 %v577
        %v902 = vunpack.c.h.b16 %v577
        %v903 = vunpack.c.l.b16 %v578
        %v904 = vunpack.c.h.b16 %v578
        %v905 = vunpack.c.l.b16 %v579
        %v906 = vunpack.c.h.b16 %v579
        %v907 = vunpack.c.l.b16 %v580
        %v908 = vunpack.c.h.b16 %v580
        %v909 = vunpack.c.l.b16 %v581
        %v910 = vunpack.c.h.b16 %v581
        %v911 = vunpack.c.l.b16 %v582
        %v912 = vunpack.c.h.b16 %v582
        %v913 = vunpack.c.l.b16 %v583
        %v914 = vunpack.c.h.b16 %v583
        %v915 = vunpack.c.l.b16 %v584
        %v916 = vunpack.c.h.b16 %v584
        %v917 = vunpack.c.l.b16 %v585
        %v918 = vunpack.c.h.b16 %v585
        %v919 = vunpack.c.l.b16 %v586
        %v920 = vunpack.c.h.b16 %v586
        %v921 = vunpack.c.l.b16 %v587
        %v922 = vunpack.c.h.b16 %v587
        %v923 = vunpack.c.l.b16 %v588
        %v924 = vunpack.c.h.b16 %v588
        %v925 = vunpack.c.l.b16 %v589
        %v926 = vunpack.c.h.b16 %v589
        %v927 = vunpack.c.l.b16 %v590
        %v928 = vunpack.c.h.b16 %v590
        %v929 = vunpack.c.l.b16 %v591
        %v930 = vunpack.c.h.b16 %v591
        %v931 = vunpack.c.l.b16 %v592
        %v932 = vunpack.c.h.b16 %v592
        %v933 = vunpack.c.l.b16 %v593
        %v934 = vunpack.c.h.b16 %v593
        %v935 = vunpack.c.l.b16 %v594
        %v936 = vunpack.c.h.b16 %v594
        %v937 = vunpack.c.l.b16 %v595
        %v938 = vunpack.c.h.b16 %v595
        %v939 = vunpack.c.l.b16 %v596
        %v940 = vunpack.c.h.b16 %v596
        %v941 = vunpack.c.l.b16 %v597
        %v942 = vunpack.c.h.b16 %v597
        %v943 = vunpack.c.l.b16 %v598
        %v944 = vunpack.c.h.b16 %v598
        %v945 = vunpack.c.l.b16 %v599
        %v946 = vunpack.c.h.b16 %v599
        %v947 = vunpack.c.l.b16 %v600
        %v948 = vunpack.c.h.b16 %v600
        %v949 = vunpack.c.l.b16 %v601
        %v950 = vunpack.c.h.b16 %v601
        %v951 = vunpack.c.l.b16 %v602
        %v952 = vunpack.c.h.b16 %v602
        %v953 = vunpack.c.l.b16 %v603
        %v954 = vunpack.c.h.b16 %v603
        %v955 = vunpack.c.l.b16 %v604
        %v956 = vunpack.c.h.b16 %v604
        %v957 = vunpack.c.l.b16 %v605
        %v958 = vunpack.c.h.b16 %v605
        %v959 = vunpack.c.l.b16 %v606
        %v960 = vunpack.c.h.b16 %v606
        %v961 = vunpack.c.l.b16 %v607
        %v962 = vunpack.c.h.b16 %v607
        %v963 = vunpack.c.l.b16 %v608
        %v964 = vunpack.c.h.b16 %v608
        %v965 = vunpack.c.l.b16 %v609
        %v966 = vunpack.c.h.b16 %v609
        %v967 = vunpack.c.l.b16 %v610
        %v968 = vunpack.c.h.b16 %v610
        %v969 = vunpack.c.l.b16 %v611
        %v970 = vunpack.c.h.b16 %v611
        %v971 = vunpack.c.l.b16 %v612
        %v972 = vunpack.c.h.b16 %v612
        %v973 = vunpack.c.l.b16 %v613
        %v974 = vunpack.c.h.b16 %v613
        %v975 = vunpack.c.l.b16 %v614
        %v976 = vunpack.c.h.b16 %v614
        %v977 = vunpack.c.l.b16 %v615
        %v978 = vunpack.c.h.b16 %v615
        %v979 = vunpack.c.l.b16 %v616
        %v980 = vunpack.c.h.b16 %v616
        %v981 = vunpack.c.l.b16 %v617
        %v982 = vunpack.c.h.b16 %v617
        %v983 = vunpack.c.l.b16 %v618
        %v984 = vunpack.c.h.b16 %v618
        %v985 = vunpack.c.l.b16 %v619
        %v986 = vunpack.c.h.b16 %v619
        %v987 = vunpack.c.l.b16 %v620
        %v988 = vunpack.c.h.b16 %v620
        %v989 = vunpack.c.l.b16 %v621
        %v990 = vunpack.c.h.b16 %v621
        %v991 = vunpack.c.l.b16 %v622
        %v992 = vunpack.c.h.b16 %v622
        %v993 = vunpack.c.l.b16 %v623
        %v994 = vunpack.c.h.b16 %v623
        %v995 = vunpack.c.l.b16 %v624
        %v996 = vunpack.c.h.b16 %v624
        %v997 = vunpack.c.l.b16 %v625
        %v998 = vunpack.c.h.b16 %v625
        %v999 = vunpack.c.l.b16 %v626
        %v1000 = vunpack.c.h.b16 %v626
        %v1001 = vunpack.c.l.b16 %v627
        %v1002 = vunpack.c.h.b16 %v627
        %v1003 = vunpack.c.l.b16 %v628
        %v1004 = vunpack.c.h.b16 %v628
        %v1005 = vunpack.c.l.b16 %v629
        %v1006 = vunpack.c.h.b16 %v629
        %v1007 = vunpack.c.l.b16 %v630
        %v1008 = vunpack.c.h.b16 %v630
        %v1009 = vunpack.c.l.b16 %v631
        %v1010 = vunpack.c.h.b16 %v631
        %v1011 = vunpack.c.l.b16 %v632
        %v1012 = vunpack.c.h.b16 %v632
        %v1013 = vunpack.c.l.b16 %v633
        %v1014 = vunpack.c.h.b16 %v633
        %v1015 = vunpack.c.l.b16 %v634
        %v1016 = vunpack.c.h.b16 %v634
        %v1017 = vunpack.c.l.b16 %v635
        %v1018 = vunpack.c.h.b16 %v635
        %v1019 = vunpack.c.l.b16 %v636
        %v1020 = vunpack.c.h.b16 %v636
        %v1021 = vunpack.c.l.b16 %v637
        %v1022 = vunpack.c.h.b16 %v637
        %v1023 = vunpack.c.l.b16 %v638
        %v1024 = vunpack.c.h.b16 %v638
        %v1025 = vunpack.c.l.b16 %v639
        %v1026 = vunpack.c.h.b16 %v639
        %v1027 = vunpack.c.l.b16 %v640
        %v1028 = vunpack.c.h.b16 %v640
        %v1029 = vunpack.c.l.b16 %v641
        %v1030 = vunpack.c.h.b16 %v641
        %v1031 = vunpack.c.l.b16 %v642
        %v1032 = vunpack.c.h.b16 %v642
        %v1033 = vunpack.c.l.b16 %v643
        %v1034 = vunpack.c.h.b16 %v643
        %v1035 = vunpack.c.l.b16 %v644
        %v1036 = vunpack.c.h.b16 %v644
        %v1037 = vunpack.c.l.b16 %v645
        %v1038 = vunpack.c.h.b16 %v645
        %v1039 = vunpack.c.l.b16 %v646
        %v1040 = vunpack.c.h.b16 %v646
        %v1041 = vunpack.c.l.b16 %v647
        %v1042 = vunpack.c.h.b16 %v647
        %v1043 = vunpack.c.l.b16 %v648
        %v1044 = vunpack.c.h.b16 %v648
        %v1045 = vunpack.c.l.b16 %v649
        %v1046 = vunpack.c.h.b16 %v649
        %v1047 = vunpack.c.l.b16 %v650
        %v1048 = vunpack.c.h.b16 %v650
        %v1049 = vunpack.c.l.b16 %v651
        %v1050 = vunpack.c.h.b16 %v651
        %v1051 = vunpack.c.l.b16 %v652
        %v1052 = vunpack.c.h.b16 %v652
        %v1053 = vunpack.c.l.b16 %v653
        %v1054 = vunpack.c.h.b16 %v653
        %v1055 = vunpack.c.l.b16 %v654
        %v1056 = vunpack.c.h.b16 %v654
        %v1057 = vunpack.c.l.b16 %v655
        %v1058 = vunpack.c.h.b16 %v655
        %v1059 = vunpack.c.l.b16 %v656
        %v1060 = vunpack.c.h.b16 %v656
        %v1061 = vunpack.c.l.b16 %v657
        %v1062 = vunpack.c.h.b16 %v657
        %v1063 = vunpack.c.l.b16 %v658
        %v1064 = vunpack.c.h.b16 %v658
        %v1065 = vpack.c.b16 %v813, %v809
        %v1066 = vpack.c.b16 %v814, %v810
        %v1067 = vpack.c.b16 %v815, %v811
        %v1068 = vpack.c.b16 %v816, %v812
        %v1069 = vpack.c.b16 %v821, %v817
        %v1070 = vpack.c.b16 %v822, %v818
        %v1071 = vpack.c.b16 %v823, %v819
        %v1072 = vpack.c.b16 %v824, %v820
        %v1073 = vpack.c.b16 %v829, %v825
        %v1074 = vpack.c.b16 %v830, %v826
        %v1075 = vpack.c.b16 %v831, %v827
        %v1076 = vpack.c.b16 %v832, %v828
        %v1077 = vpack.c.b16 %v837, %v833
        %v1078 = vpack.c.b16 %v838, %v834
        %v1079 = vpack.c.b16 %v839, %v835
        %v1080 = vpack.c.b16 %v840, %v836
        %v1081 = vpack.c.b16 %v845, %v841
        %v1082 = vpack.c.b16 %v846, %v842
        %v1083 = vpack.c.b16 %v847, %v843
        %v1084 = vpack.c.b16 %v848, %v844
        %v1085 = vpack.c.b16 %v853, %v849
        %v1086 = vpack.c.b16 %v854, %v850
        %v1087 = vpack.c.b16 %v855, %v851
        %v1088 = vpack.c.b16 %v856, %v852
        %v1089 = vpack.c.b16 %v861, %v857
        %v1090 = vpack.c.b16 %v862, %v858
        %v1091 = vpack.c.b16 %v863, %v859
        %v1092 = vpack.c.b16 %v864, %v860
        %v1093 = vpack.c.b16 %v869, %v865
        %v1094 = vpack.c.b16 %v870, %v866
        %v1095 = vpack.c.b16 %v871, %v867
        %v1096 = vpack.c.b16 %v872, %v868
        %v1097 = vpack.c.b16 %v877, %v873
        %v1098 = vpack.c.b16 %v878, %v874
        %v1099 = vpack.c.b16 %v879, %v875
        %v1100 = vpack.c.b16 %v880, %v876
        %v1101 = vpack.c.b16 %v885, %v881
        %v1102 = vpack.c.b16 %v886, %v882
        %v1103 = vpack.c.b16 %v887, %v883
        %v1104 = vpack.c.b16 %v888, %v884
        %v1105 = vpack.c.b16 %v893, %v889
        %v1106 = vpack.c.b16 %v894, %v890
        %v1107 = vpack.c.b16 %v895, %v891
        %v1108 = vpack.c.b16 %v896, %v892
        %v1109 = vpack.c.b16 %v901, %v897
        %v1110 = vpack.c.b16 %v902, %v898
        %v1111 = vpack.c.b16 %v903, %v899
        %v1112 = vpack.c.b16 %v904, %v900
        %v1113 = vpack.c.b16 %v909, %v905
        %v1114 = vpack.c.b16 %v910, %v906
        %v1115 = vpack.c.b16 %v911, %v907
        %v1116 = vpack.c.b16 %v912, %v908
        %v1117 = vpack.c.b16 %v917, %v913
        %v1118 = vpack.c.b16 %v918, %v914
        %v1119 = vpack.c.b16 %v919, %v915
        %v1120 = vpack.c.b16 %v920, %v916
        %v1121 = vpack.c.b16 %v925, %v921
        %v1122 = vpack.c.b16 %v926, %v922
        %v1123 = vpack.c.b16 %v927, %v923
        %v1124 = vpack.c.b16 %v928, %v924
        %v1125 = vpack.c.b16 %v933, %v929
        %v1126 = vpack.c.b16 %v934, %v930
        %v1127 = vpack.c.b16 %v935, %v931
        %v1128 = vpack.c.b16 %v936, %v932
        %v1129 = vpack.c.b16 %v941, %v937
        %v1130 = vpack.c.b16 %v942, %v938
        %v1131 = vpack.c.b16 %v943, %v939
        %v1132 = vpack.c.b16 %v944, %v940
        %v1133 = vpack.c.b16 %v949, %v945
        %v1134 = vpack.c.b16 %v950, %v946
        %v1135 = vpack.c.b16 %v951, %v947
        %v1136 = vpack.c.b16 %v952, %v948
        %v1137 = vpack.c.b16 %v957, %v953
        %v1138 = vpack.c.b16 %v958, %v954
        %v1139 = vpack.c.b16 %v959, %v955
        %v1140 = vpack.c.b16 %v960, %v956
        %v1141 = vpack.c.b16 %v965, %v961
        %v1142 = vpack.c.b16 %v966, %v962
        %v1143 = vpack.c.b16 %v967, %v963
        %v1144 = vpack.c.b16 %v968, %v964
        %v1145 = vpack.c.b16 %v973, %v969
        %v1146 = vpack.c.b16 %v974, %v970
        %v1147 = vpack.c.b16 %v975, %v971
        %v1148 = vpack.c.b16 %v976, %v972
        %v1149 = vpack.c.b16 %v981, %v977
        %v1150 = vpack.c.b16 %v982, %v978
        %v1151 = vpack.c.b16 %v983, %v979
        %v1152 = vpack.c.b16 %v984, %v980
        %v1153 = vpack.c.b16 %v989, %v985
        %v1154 = vpack.c.b16 %v990, %v986
        %v1155 = vpack.c.b16 %v991, %v987
        %v1156 = vpack.c.b16 %v992, %v988
        %v1157 = vpack.c.b16 %v997, %v993
        %v1158 = vpack.c.b16 %v998, %v994
        %v1159 = vpack.c.b16 %v999, %v995
        %v1160 = vpack.c.b16 %v1000, %v996
        %v1161 = vpack.c.b16 %v1005, %v1001
        %v1162 = vpack.c.b16 %v1006, %v1002
        %v1163 = vpack.c.b16 %v1007, %v1003
        %v1164 = vpack.c.b16 %v1008, %v1004
        %v1165 = vpack.c.b16 %v1013, %v1009
        %v1166 = vpack.c.b16 %v1014, %v1010
        %v1167 = vpack.c.b16 %v1015, %v1011
        %v1168 = vpack.c.b16 %v1016, %v1012
        %v1169 = vpack.c.b16 %v1021, %v1017
        %v1170 = vpack.c.b16 %v1022, %v1018
        %v1171 = vpack.c.b16 %v1023, %v1019
        %v1172 = vpack.c.b16 %v1024, %v1020
        %v1173 = vpack.c.b16 %v1029, %v1025
        %v1174 = vpack.c.b16 %v1030, %v1026
        %v1175 = vpack.c.b16 %v1031, %v1027
        %v1176 = vpack.c.b16 %v1032, %v1028
        %v1177 = vpack.c.b16 %v1037, %v1033
        %v1178 = vpack.c.b16 %v1038, %v1034
        %v1179 = vpack.c.b16 %v1039, %v1035
        %v1180 = vpack.c.b16 %v1040, %v1036
        %v1181 = vpack.c.b16 %v1045, %v1041
        %v1182 = vpack.c.b16 %v1046, %v1042
        %v1183 = vpack.c.b16 %v1047, %v1043
        %v1184 = vpack.c.b16 %v1048, %v1044
        %v1185 = vpack.c.b16 %v1053, %v1049
        %v1186 = vpack.c.b16 %v1054, %v1050
        %v1187 = vpack.c.b16 %v1055, %v1051
        %v1188 = vpack.c.b16 %v1056, %v1052
        %v1189 = vpack.c.b16 %v1061, %v1057
        %v1190 = vpack.c.b16 %v1062, %v1058
        %v1191 = vpack.c.b16 %v1063, %v1059
        %v1192 = vpack.c.b16 %v1064, %v1060
        %1321 = vmatprep.subr.bf16.mxu0 %v1066
        %1322 = vmatpush1.bf16.msra.mxu0 %v1065
        %1323 = vmatprep.subr.bf16.mxu0 %v1070
        %1324 = vmatpush1.bf16.msra.mxu0 %v1069
        %1325 = vmatprep.subr.bf16.mxu0 %v1074
        %1326 = vmatpush1.bf16.msra.mxu0 %v1073
        %1327 = vmatprep.subr.bf16.mxu0 %v1078
        %1328 = vmatpush1.bf16.msra.mxu0 %v1077
        %1329 = vmatprep.subr.bf16.mxu0 %v1082
        %1330 = vmatpush1.bf16.msra.mxu0 %v1081
        %1331 = vmatprep.subr.bf16.mxu0 %v1086
        %1332 = vmatpush1.bf16.msra.mxu0 %v1085
        %1333 = vmatprep.subr.bf16.mxu0 %v1090
        %1334 = vmatpush1.bf16.msra.mxu0 %v1089
        %1335 = vmatprep.subr.bf16.mxu0 %v1094
        %1336 = vmatpush1.bf16.msra.mxu0 %v1093
        %1337 = vmatprep.subr.bf16.mxu0 %v1098
        %1338 = vmatpush1.bf16.msra.mxu0 %v1097
        %1339 = vmatprep.subr.bf16.mxu0 %v1102
        %1340 = vmatpush1.bf16.msra.mxu0 %v1101
        %1341 = vmatprep.subr.bf16.mxu0 %v1106
        %1342 = vmatpush1.bf16.msra.mxu0 %v1105
        %1343 = vmatprep.subr.bf16.mxu0 %v1110
        %1344 = vmatpush1.bf16.msra.mxu0 %v1109
        %1345 = vmatprep.subr.bf16.mxu0 %v1114
        %1346 = vmatpush1.bf16.msra.mxu0 %v1113
        %1347 = vmatprep.subr.bf16.mxu0 %v1118
        %1348 = vmatpush1.bf16.msra.mxu0 %v1117
        %1349 = vmatprep.subr.bf16.mxu0 %v1122
        %1350 = vmatpush1.bf16.msra.mxu0 %v1121
        %1351 = vmatprep.subr.bf16.mxu0 %v1126
        %1352 = vmatpush1.bf16.msra.mxu0 %v1125
        %1353 = vmatprep.mubr.bf16.mxu0 %v528
        %1354 = vmatmul.mubr.bf16.gmra.mrb[0].mxu0 %v527
        %v1355 = vpop.f32.mrb[0].mxu0
        %v1356 = vadd.f32 %v664, %v1355
        %v1357 = vpop.f32.mrb[0].mxu0
        %v1358 = vadd.f32 %v668, %v1357
        %v1359 = vpop.f32.mrb[0].mxu0
        %v1360 = vadd.f32 %v664, %v1359
        %v1361 = vpop.f32.mrb[0].mxu0
        %v1362 = vadd.f32 %v668, %v1361
        %1363 = vdwg.mxu0
        %1364 = vmatprep.subr.bf16.mxu0 %v1130
        %1365 = vmatpush1.bf16.msra.mxu0 %v1129
        %1366 = vmatprep.subr.bf16.mxu0 %v1134
        %1367 = vmatpush1.bf16.msra.mxu0 %v1133
        %1368 = vmatprep.subr.bf16.mxu0 %v1138
        %1369 = vmatpush1.bf16.msra.mxu0 %v1137
        %1370 = vmatprep.subr.bf16.mxu0 %v1142
        %1371 = vmatpush1.bf16.msra.mxu0 %v1141
        %1372 = vmatprep.subr.bf16.mxu0 %v1146
        %1373 = vmatpush1.bf16.msra.mxu0 %v1145
        %1374 = vmatprep.subr.bf16.mxu0 %v1150
        %1375 = vmatpush1.bf16.msra.mxu0 %v1149
        %1376 = vmatprep.subr.bf16.mxu0 %v1154
        %1377 = vmatpush1.bf16.msra.mxu0 %v1153
        %1378 = vmatprep.subr.bf16.mxu0 %v1158
        %1379 = vmatpush1.bf16.msra.mxu0 %v1157
        %1380 = vmatprep.subr.bf16.mxu0 %v1162
        %1381 = vmatpush1.bf16.msra.mxu0 %v1161
        %1382 = vmatprep.subr.bf16.mxu0 %v1166
        %1383 = vmatpush1.bf16.msra.mxu0 %v1165
        %1384 = vmatprep.subr.bf16.mxu0 %v1170
        %1385 = vmatpush1.bf16.msra.mxu0 %v1169
        %1386 = vmatprep.subr.bf16.mxu0 %v1174
        %1387 = vmatpush1.bf16.msra.mxu0 %v1173
        %1388 = vmatprep.subr.bf16.mxu0 %v1178
        %1389 = vmatpush1.bf16.msra.mxu0 %v1177
        %1390 = vmatprep.subr.bf16.mxu0 %v1182
        %1391 = vmatpush1.bf16.msra.mxu0 %v1181
        %1392 = vmatprep.subr.bf16.mxu0 %v1186
        %1393 = vmatpush1.bf16.msra.mxu0 %v1185
        %1394 = vmatprep.subr.bf16.mxu0 %v1190
        %1395 = vmatpush1.bf16.msra.mxu0 %v1189
        %1396 = vmatprep.mubr.bf16.mxu0 %v530
        %1397 = vmatmul.mubr.bf16.gmra.mrb[0].mxu0 %v529
        %v1398 = vpop.f32.mrb[0].mxu0
        %v1399 = vadd.f32 %v1356, %v1398
        %v1400 = vpop.f32.mrb[0].mxu0
        %v1401 = vadd.f32 %v1358, %v1400
        %v1402 = vpop.f32.mrb[0].mxu0
        %v1403 = vadd.f32 %v1360, %v1402
        %v1404 = vpop.f32.mrb[0].mxu0
        %v1405 = vadd.f32 %v1362, %v1404
        %1406 = vdwg.mxu0
        %1407 = vmatprep.subr.bf16.mxu0 %v1068
        %1408 = vmatpush1.bf16.msra.mxu0 %v1067
        %1409 = vmatprep.subr.bf16.mxu0 %v1072
        %1410 = vmatpush1.bf16.msra.mxu0 %v1071
        %1411 = vmatprep.subr.bf16.mxu0 %v1076
        %1412 = vmatpush1.bf16.msra.mxu0 %v1075
        %1413 = vmatprep.subr.bf16.mxu0 %v1080
        %1414 = vmatpush1.bf16.msra.mxu0 %v1079
        %1415 = vmatprep.subr.bf16.mxu0 %v1084
        %1416 = vmatpush1.bf16.msra.mxu0 %v1083
        %1417 = vmatprep.subr.bf16.mxu0 %v1088
        %1418 = vmatpush1.bf16.msra.mxu0 %v1087
        %1419 = vmatprep.subr.bf16.mxu0 %v1092
        %1420 = vmatpush1.bf16.msra.mxu0 %v1091
        %1421 = vmatprep.subr.bf16.mxu0 %v1096
        %1422 = vmatpush1.bf16.msra.mxu0 %v1095
        %1423 = vmatprep.subr.bf16.mxu0 %v1100
        %1424 = vmatpush1.bf16.msra.mxu0 %v1099
        %1425 = vmatprep.subr.bf16.mxu0 %v1104
        %1426 = vmatpush1.bf16.msra.mxu0 %v1103
        %1427 = vmatprep.subr.bf16.mxu0 %v1108
        %1428 = vmatpush1.bf16.msra.mxu0 %v1107
        %1429 = vmatprep.subr.bf16.mxu0 %v1112
        %1430 = vmatpush1.bf16.msra.mxu0 %v1111
        %1431 = vmatprep.subr.bf16.mxu0 %v1116
        %1432 = vmatpush1.bf16.msra.mxu0 %v1115
        %1433 = vmatprep.subr.bf16.mxu0 %v1120
        %1434 = vmatpush1.bf16.msra.mxu0 %v1119
        %1435 = vmatprep.subr.bf16.mxu0 %v1124
        %1436 = vmatpush1.bf16.msra.mxu0 %v1123
        %1437 = vmatprep.subr.bf16.mxu0 %v1128
        %1438 = vmatpush1.bf16.msra.mxu0 %v1127
        %1439 = vmatprep.mubr.bf16.mxu0 %v528
        %1440 = vmatmul.mubr.bf16.gmra.mrb[0].mxu0 %v527
        %v1441 = vpop.f32.mrb[0].mxu0
        %v1442 = vadd.f32 %v672, %v1441
        %v1443 = vpop.f32.mrb[0].mxu0
        %v1444 = vadd.f32 %v676, %v1443
        %v1445 = vpop.f32.mrb[0].mxu0
        %v1446 = vadd.f32 %v672, %v1445
        %v1447 = vpop.f32.mrb[0].mxu0
        %v1448 = vadd.f32 %v676, %v1447
        %1449 = vdwg.mxu0
        %1450 = vmatprep.subr.bf16.mxu0 %v1132
        %1451 = vmatpush1.bf16.msra.mxu0 %v1131
        %1452 = vmatprep.subr.bf16.mxu0 %v1136
        %1453 = vmatpush1.bf16.msra.mxu0 %v1135
        %1454 = vmatprep.subr.bf16.mxu0 %v1140
        %1455 = vmatpush1.bf16.msra.mxu0 %v1139
        %1456 = vmatprep.subr.bf16.mxu0 %v1144
        %1457 = vmatpush1.bf16.msra.mxu0 %v1143
        %1458 = vmatprep.subr.bf16.mxu0 %v1148
        %1459 = vmatpush1.bf16.msra.mxu0 %v1147
        %1460 = vmatprep.subr.bf16.mxu0 %v1152
        %1461 = vmatpush1.bf16.msra.mxu0 %v1151
        %1462 = vmatprep.subr.bf16.mxu0 %v1156
        %1463 = vmatpush1.bf16.msra.mxu0 %v1155
        %1464 = vmatprep.subr.bf16.mxu0 %v1160
        %1465 = vmatpush1.bf16.msra.mxu0 %v1159
        %1466 = vmatprep.subr.bf16.mxu0 %v1164
        %1467 = vmatpush1.bf16.msra.mxu0 %v1163
        %1468 = vmatprep.subr.bf16.mxu0 %v1168
        %1469 = vmatpush1.bf16.msra.mxu0 %v1167
        %1470 = vmatprep.subr.bf16.mxu0 %v1172
        %1471 = vmatpush1.bf16.msra.mxu0 %v1171
        %1472 = vmatprep.subr.bf16.mxu0 %v1176
        %1473 = vmatpush1.bf16.msra.mxu0 %v1175
        %1474 = vmatprep.subr.bf16.mxu0 %v1180
        %1475 = vmatpush1.bf16.msra.mxu0 %v1179
        %1476 = vmatprep.subr.bf16.mxu0 %v1184
        %1477 = vmatpush1.bf16.msra.mxu0 %v1183
        %1478 = vmatprep.subr.bf16.mxu0 %v1188
        %1479 = vmatpush1.bf16.msra.mxu0 %v1187
        %1480 = vmatprep.subr.bf16.mxu0 %v1192
        %1481 = vmatpush1.bf16.msra.mxu0 %v1191
        %1482 = vmatprep.mubr.bf16.mxu0 %v530
        %1483 = vmatmul.mubr.bf16.gmra.mrb[0].mxu0 %v529
        %v1484 = vpop.f32.mrb[0].mxu0
        %v1485 = vadd.f32 %v1442, %v1484
        %v1486 = vpop.f32.mrb[0].mxu0
        %v1487 = vadd.f32 %v1444, %v1486
        %v1488 = vpop.f32.mrb[0].mxu0
        %v1489 = vadd.f32 %v1446, %v1488
        %v1490 = vpop.f32.mrb[0].mxu0
        %v1491 = vadd.f32 %v1448, %v1490
        %1492 = vdwg.mxu0
        %v1493 = vmax.f32 %v1399, 0.0
        %v1494 = vmax.f32 %v1401, 0.0
        %v1495 = vmax.f32 %v1485, 0.0
        %v1496 = vmax.f32 %v1487, 0.0
        %v1497 = vmax.f32 %v1403, 0.0
        %v1498 = vmax.f32 %v1405, 0.0
        %v1499 = vmax.f32 %v1489, 0.0
        %v1500 = vmax.f32 %v1491, 0.0
        %v1501 = vpack.c.bf16 %v1497, %v1493
        %v1502 = vpack.c.bf16 %v1498, %v1494
        %v1503 = vpack.c.bf16 %v1499, %v1495
        %v1504 = vpack.c.bf16 %v1500, %v1496
        %v1505 = vld [vmem:[#allocation10] sm:$0xff]
        %v1506 = vld [vmem:[#allocation10 + $0x8] sm:$0xff]
        %v1507 = vld [vmem:[#allocation10 + $0x10] sm:$0xff]
        %v1508 = vld [vmem:[#allocation10 + $0x18] sm:$0xff]
        %v1509 = vld [vmem:[#allocation10 + $0x20] sm:$0xff]
        %v1510 = vld [vmem:[#allocation10 + $0x28] sm:$0xff]
        %v1511 = vld [vmem:[#allocation10 + $0x30] sm:$0xff]
        %v1512 = vld [vmem:[#allocation10 + $0x38] sm:$0xff]
        %v1513 = vld [vmem:[#allocation10 + $0x40] sm:$0xff]
        %v1514 = vld [vmem:[#allocation10 + $0x48] sm:$0xff]
        %v1515 = vld [vmem:[#allocation10 + $0x50] sm:$0xff]
        %v1516 = vld [vmem:[#allocation10 + $0x58] sm:$0xff]
        %v1517 = vld [vmem:[#allocation10 + $0x60] sm:$0xff]
        %v1518 = vld [vmem:[#allocation10 + $0x68] sm:$0xff]
        %v1519 = vld [vmem:[#allocation10 + $0x70] sm:$0xff]
        %v1520 = vld [vmem:[#allocation10 + $0x78] sm:$0xff]
        %v1521 = vld [vmem:[#allocation10 + $0x80] sm:$0xff]
        %v1522 = vld [vmem:[#allocation10 + $0x88] sm:$0xff]
        %v1523 = vld [vmem:[#allocation10 + $0x90] sm:$0xff]
        %v1524 = vld [vmem:[#allocation10 + $0x98] sm:$0xff]
        %v1525 = vld [vmem:[#allocation10 + $0xa0] sm:$0xff]
        %v1526 = vld [vmem:[#allocation10 + $0xa8] sm:$0xff]
        %v1527 = vld [vmem:[#allocation10 + $0xb0] sm:$0xff]
        %v1528 = vld [vmem:[#allocation10 + $0xb8] sm:$0xff]
        %v1529 = vld [vmem:[#allocation10 + $0xc0] sm:$0xff]
        %v1530 = vld [vmem:[#allocation10 + $0xc8] sm:$0xff]
        %v1531 = vld [vmem:[#allocation10 + $0xd0] sm:$0xff]
        %v1532 = vld [vmem:[#allocation10 + $0xd8] sm:$0xff]
        %v1533 = vld [vmem:[#allocation10 + $0xe0] sm:$0xff]
        %v1534 = vld [vmem:[#allocation10 + $0xe8] sm:$0xff]
        %v1535 = vld [vmem:[#allocation10 + $0xf0] sm:$0xff]
        %v1536 = vld [vmem:[#allocation10 + $0xf8] sm:$0xff]
        %v1537 = vld [vmem:[#allocation10 + $0x100] sm:$0xff]
        %v1538 = vld [vmem:[#allocation10 + $0x108] sm:$0xff]
        %v1539 = vld [vmem:[#allocation10 + $0x110] sm:$0xff]
        %v1540 = vld [vmem:[#allocation10 + $0x118] sm:$0xff]
        %v1541 = vld [vmem:[#allocation10 + $0x120] sm:$0xff]
        %v1542 = vld [vmem:[#allocation10 + $0x128] sm:$0xff]
        %v1543 = vld [vmem:[#allocation10 + $0x130] sm:$0xff]
        %v1544 = vld [vmem:[#allocation10 + $0x138] sm:$0xff]
        %v1545 = vld [vmem:[#allocation10 + $0x140] sm:$0xff]
        %v1546 = vld [vmem:[#allocation10 + $0x148] sm:$0xff]
        %v1547 = vld [vmem:[#allocation10 + $0x150] sm:$0xff]
        %v1548 = vld [vmem:[#allocation10 + $0x158] sm:$0xff]
        %v1549 = vld [vmem:[#allocation10 + $0x160] sm:$0xff]
        %v1550 = vld [vmem:[#allocation10 + $0x168] sm:$0xff]
        %v1551 = vld [vmem:[#allocation10 + $0x170] sm:$0xff]
        %v1552 = vld [vmem:[#allocation10 + $0x178] sm:$0xff]
        %v1553 = vld [vmem:[#allocation10 + $0x180] sm:$0xff]
        %v1554 = vld [vmem:[#allocation10 + $0x188] sm:$0xff]
        %v1555 = vld [vmem:[#allocation10 + $0x190] sm:$0xff]
        %v1556 = vld [vmem:[#allocation10 + $0x198] sm:$0xff]
        %v1557 = vld [vmem:[#allocation10 + $0x1a0] sm:$0xff]
        %v1558 = vld [vmem:[#allocation10 + $0x1a8] sm:$0xff]
        %v1559 = vld [vmem:[#allocation10 + $0x1b0] sm:$0xff]
        %v1560 = vld [vmem:[#allocation10 + $0x1b8] sm:$0xff]
        %v1561 = vld [vmem:[#allocation10 + $0x1c0] sm:$0xff]
        %v1562 = vld [vmem:[#allocation10 + $0x1c8] sm:$0xff]
        %v1563 = vld [vmem:[#allocation10 + $0x1d0] sm:$0xff]
        %v1564 = vld [vmem:[#allocation10 + $0x1d8] sm:$0xff]
        %v1565 = vld [vmem:[#allocation10 + $0x1e0] sm:$0xff]
        %v1566 = vld [vmem:[#allocation10 + $0x1e8] sm:$0xff]
        %v1567 = vld [vmem:[#allocation10 + $0x1f0] sm:$0xff]
        %v1568 = vld [vmem:[#allocation10 + $0x1f8] sm:$0xff]
        %v1569 = vld [vmem:[#allocation10 + $0x200] sm:$0xff]
        %v1570 = vld [vmem:[#allocation10 + $0x208] sm:$0xff]
        %v1571 = vld [vmem:[#allocation10 + $0x210] sm:$0xff]
        %v1572 = vld [vmem:[#allocation10 + $0x218] sm:$0xff]
        %v1573 = vld [vmem:[#allocation10 + $0x220] sm:$0xff]
        %v1574 = vld [vmem:[#allocation10 + $0x228] sm:$0xff]
        %v1575 = vld [vmem:[#allocation10 + $0x230] sm:$0xff]
        %v1576 = vld [vmem:[#allocation10 + $0x238] sm:$0xff]
        %v1577 = vld [vmem:[#allocation10 + $0x240] sm:$0xff]
        %v1578 = vld [vmem:[#allocation10 + $0x248] sm:$0xff]
        %v1579 = vld [vmem:[#allocation10 + $0x250] sm:$0xff]
        %v1580 = vld [vmem:[#allocation10 + $0x258] sm:$0xff]
        %v1581 = vld [vmem:[#allocation10 + $0x260] sm:$0xff]
        %v1582 = vld [vmem:[#allocation10 + $0x268] sm:$0xff]
        %v1583 = vld [vmem:[#allocation10 + $0x270] sm:$0xff]
        %v1584 = vld [vmem:[#allocation10 + $0x278] sm:$0xff]
        %v1585 = vld [vmem:[#allocation10 + $0x280] sm:$0xff]
        %v1586 = vld [vmem:[#allocation10 + $0x288] sm:$0xff]
        %v1587 = vld [vmem:[#allocation10 + $0x290] sm:$0xff]
        %v1588 = vld [vmem:[#allocation10 + $0x298] sm:$0xff]
        %v1589 = vld [vmem:[#allocation10 + $0x2a0] sm:$0xff]
        %v1590 = vld [vmem:[#allocation10 + $0x2a8] sm:$0xff]
        %v1591 = vld [vmem:[#allocation10 + $0x2b0] sm:$0xff]
        %v1592 = vld [vmem:[#allocation10 + $0x2b8] sm:$0xff]
        %v1593 = vld [vmem:[#allocation10 + $0x2c0] sm:$0xff]
        %v1594 = vld [vmem:[#allocation10 + $0x2c8] sm:$0xff]
        %v1595 = vld [vmem:[#allocation10 + $0x2d0] sm:$0xff]
        %v1596 = vld [vmem:[#allocation10 + $0x2d8] sm:$0xff]
        %v1597 = vld [vmem:[#allocation10 + $0x2e0] sm:$0xff]
        %v1598 = vld [vmem:[#allocation10 + $0x2e8] sm:$0xff]
        %v1599 = vld [vmem:[#allocation10 + $0x2f0] sm:$0xff]
        %v1600 = vld [vmem:[#allocation10 + $0x2f8] sm:$0xff]
        %v1601 = vld [vmem:[#allocation10 + $0x300] sm:$0xff]
        %v1602 = vld [vmem:[#allocation10 + $0x308] sm:$0xff]
        %v1603 = vld [vmem:[#allocation10 + $0x310] sm:$0xff]
        %v1604 = vld [vmem:[#allocation10 + $0x318] sm:$0xff]
        %v1605 = vld [vmem:[#allocation10 + $0x320] sm:$0xff]
        %v1606 = vld [vmem:[#allocation10 + $0x328] sm:$0xff]
        %v1607 = vld [vmem:[#allocation10 + $0x330] sm:$0xff]
        %v1608 = vld [vmem:[#allocation10 + $0x338] sm:$0xff]
        %v1609 = vld [vmem:[#allocation10 + $0x340] sm:$0xff]
        %v1610 = vld [vmem:[#allocation10 + $0x348] sm:$0xff]
        %v1611 = vld [vmem:[#allocation10 + $0x350] sm:$0xff]
        %v1612 = vld [vmem:[#allocation10 + $0x358] sm:$0xff]
        %v1613 = vld [vmem:[#allocation10 + $0x360] sm:$0xff]
        %v1614 = vld [vmem:[#allocation10 + $0x368] sm:$0xff]
        %v1615 = vld [vmem:[#allocation10 + $0x370] sm:$0xff]
        %v1616 = vld [vmem:[#allocation10 + $0x378] sm:$0xff]
        %v1617 = vld [vmem:[#allocation10 + $0x380] sm:$0xff]
        %v1618 = vld [vmem:[#allocation10 + $0x388] sm:$0xff]
        %v1619 = vld [vmem:[#allocation10 + $0x390] sm:$0xff]
        %v1620 = vld [vmem:[#allocation10 + $0x398] sm:$0xff]
        %v1621 = vld [vmem:[#allocation10 + $0x3a0] sm:$0xff]
        %v1622 = vld [vmem:[#allocation10 + $0x3a8] sm:$0xff]
        %v1623 = vld [vmem:[#allocation10 + $0x3b0] sm:$0xff]
        %v1624 = vld [vmem:[#allocation10 + $0x3b8] sm:$0xff]
        %v1625 = vld [vmem:[#allocation10 + $0x3c0] sm:$0xff]
        %v1626 = vld [vmem:[#allocation10 + $0x3c8] sm:$0xff]
        %v1627 = vld [vmem:[#allocation10 + $0x3d0] sm:$0xff]
        %v1628 = vld [vmem:[#allocation10 + $0x3d8] sm:$0xff]
        %v1629 = vld [vmem:[#allocation10 + $0x3e0] sm:$0xff]
        %v1630 = vld [vmem:[#allocation10 + $0x3e8] sm:$0xff]
        %v1631 = vld [vmem:[#allocation10 + $0x3f0] sm:$0xff]
        %v1632 = vld [vmem:[#allocation10 + $0x3f8] sm:$0xff]
        %v1633 = vld [vmem:[#allocation10 + $0x400] sm:$0xff]
        %v1634 = vld [vmem:[#allocation10 + $0x408] sm:$0xff]
        %v1635 = vld [vmem:[#allocation10 + $0x410] sm:$0xff]
        %v1636 = vld [vmem:[#allocation10 + $0x418] sm:$0xff]
        %v1637 = vld [vmem:[#allocation10 + $0x420] sm:$0xff]
        %v1638 = vld [vmem:[#allocation10 + $0x428] sm:$0xff]
        %v1639 = vld [vmem:[#allocation10 + $0x430] sm:$0xff]
        %v1640 = vld [vmem:[#allocation10 + $0x438] sm:$0xff]
        %v1641 = vld [vmem:[#allocation10 + $0x440] sm:$0xff]
        %v1642 = vld [vmem:[#allocation10 + $0x448] sm:$0xff]
        %v1643 = vld [vmem:[#allocation10 + $0x450] sm:$0xff]
        %v1644 = vld [vmem:[#allocation10 + $0x458] sm:$0xff]
        %v1645 = vld [vmem:[#allocation10 + $0x460] sm:$0xff]
        %v1646 = vld [vmem:[#allocation10 + $0x468] sm:$0xff]
        %v1647 = vld [vmem:[#allocation10 + $0x470] sm:$0xff]
        %v1648 = vld [vmem:[#allocation10 + $0x478] sm:$0xff]
        %v1649 = vld [vmem:[#allocation10 + $0x480] sm:$0xff]
        %v1650 = vld [vmem:[#allocation10 + $0x488] sm:$0xff]
        %v1651 = vld [vmem:[#allocation10 + $0x490] sm:$0xff]
        %v1652 = vld [vmem:[#allocation10 + $0x498] sm:$0xff]
        %v1653 = vld [vmem:[#allocation10 + $0x4a0] sm:$0xff]
        %v1654 = vld [vmem:[#allocation10 + $0x4a8] sm:$0xff]
        %v1655 = vld [vmem:[#allocation10 + $0x4b0] sm:$0xff]
        %v1656 = vld [vmem:[#allocation10 + $0x4b8] sm:$0xff]
        %v1657 = vld [vmem:[#allocation10 + $0x4c0] sm:$0xff]
        %v1658 = vld [vmem:[#allocation10 + $0x4c8] sm:$0xff]
        %v1659 = vld [vmem:[#allocation10 + $0x4d0] sm:$0xff]
        %v1660 = vld [vmem:[#allocation10 + $0x4d8] sm:$0xff]
        %v1661 = vld [vmem:[#allocation10 + $0x4e0] sm:$0xff]
        %v1662 = vld [vmem:[#allocation10 + $0x4e8] sm:$0xff]
        %v1663 = vld [vmem:[#allocation10 + $0x4f0] sm:$0xff]
        %v1664 = vld [vmem:[#allocation10 + $0x4f8] sm:$0xff]
        %v1665 = vld [vmem:[#allocation10 + $0x500] sm:$0xff]
        %v1666 = vld [vmem:[#allocation10 + $0x508] sm:$0xff]
        %v1667 = vld [vmem:[#allocation10 + $0x510] sm:$0xff]
        %v1668 = vld [vmem:[#allocation10 + $0x518] sm:$0xff]
        %v1669 = vld [vmem:[#allocation10 + $0x520] sm:$0xff]
        %v1670 = vld [vmem:[#allocation10 + $0x528] sm:$0xff]
        %v1671 = vld [vmem:[#allocation10 + $0x530] sm:$0xff]
        %v1672 = vld [vmem:[#allocation10 + $0x538] sm:$0xff]
        %v1673 = vld [vmem:[#allocation10 + $0x540] sm:$0xff]
        %v1674 = vld [vmem:[#allocation10 + $0x548] sm:$0xff]
        %v1675 = vld [vmem:[#allocation10 + $0x550] sm:$0xff]
        %v1676 = vld [vmem:[#allocation10 + $0x558] sm:$0xff]
        %v1677 = vld [vmem:[#allocation10 + $0x560] sm:$0xff]
        %v1678 = vld [vmem:[#allocation10 + $0x568] sm:$0xff]
        %v1679 = vld [vmem:[#allocation10 + $0x570] sm:$0xff]
        %v1680 = vld [vmem:[#allocation10 + $0x578] sm:$0xff]
        %v1681 = vld [vmem:[#allocation10 + $0x580] sm:$0xff]
        %v1682 = vld [vmem:[#allocation10 + $0x588] sm:$0xff]
        %v1683 = vld [vmem:[#allocation10 + $0x590] sm:$0xff]
        %v1684 = vld [vmem:[#allocation10 + $0x598] sm:$0xff]
        %v1685 = vld [vmem:[#allocation10 + $0x5a0] sm:$0xff]
        %v1686 = vld [vmem:[#allocation10 + $0x5a8] sm:$0xff]
        %v1687 = vld [vmem:[#allocation10 + $0x5b0] sm:$0xff]
        %v1688 = vld [vmem:[#allocation10 + $0x5b8] sm:$0xff]
        %v1689 = vld [vmem:[#allocation10 + $0x5c0] sm:$0xff]
        %v1690 = vld [vmem:[#allocation10 + $0x5c8] sm:$0xff]
        %v1691 = vld [vmem:[#allocation10 + $0x5d0] sm:$0xff]
        %v1692 = vld [vmem:[#allocation10 + $0x5d8] sm:$0xff]
        %v1693 = vld [vmem:[#allocation10 + $0x5e0] sm:$0xff]
        %v1694 = vld [vmem:[#allocation10 + $0x5e8] sm:$0xff]
        %v1695 = vld [vmem:[#allocation10 + $0x5f0] sm:$0xff]
        %v1696 = vld [vmem:[#allocation10 + $0x5f8] sm:$0xff]
        %v1697 = vld [vmem:[#allocation10 + $0x600] sm:$0xff]
        %v1698 = vld [vmem:[#allocation10 + $0x608] sm:$0xff]
        %v1699 = vld [vmem:[#allocation10 + $0x610] sm:$0xff]
        %v1700 = vld [vmem:[#allocation10 + $0x618] sm:$0xff]
        %v1701 = vld [vmem:[#allocation10 + $0x620] sm:$0xff]
        %v1702 = vld [vmem:[#allocation10 + $0x628] sm:$0xff]
        %v1703 = vld [vmem:[#allocation10 + $0x630] sm:$0xff]
        %v1704 = vld [vmem:[#allocation10 + $0x638] sm:$0xff]
        %v1705 = vld [vmem:[#allocation10 + $0x640] sm:$0xff]
        %v1706 = vld [vmem:[#allocation10 + $0x648] sm:$0xff]
        %v1707 = vld [vmem:[#allocation10 + $0x650] sm:$0xff]
        %v1708 = vld [vmem:[#allocation10 + $0x658] sm:$0xff]
        %v1709 = vld [vmem:[#allocation10 + $0x660] sm:$0xff]
        %v1710 = vld [vmem:[#allocation10 + $0x668] sm:$0xff]
        %v1711 = vld [vmem:[#allocation10 + $0x670] sm:$0xff]
        %v1712 = vld [vmem:[#allocation10 + $0x678] sm:$0xff]
        %v1713 = vld [vmem:[#allocation10 + $0x680] sm:$0xff]
        %v1714 = vld [vmem:[#allocation10 + $0x688] sm:$0xff]
        %v1715 = vld [vmem:[#allocation10 + $0x690] sm:$0xff]
        %v1716 = vld [vmem:[#allocation10 + $0x698] sm:$0xff]
        %v1717 = vld [vmem:[#allocation10 + $0x6a0] sm:$0xff]
        %v1718 = vld [vmem:[#allocation10 + $0x6a8] sm:$0xff]
        %v1719 = vld [vmem:[#allocation10 + $0x6b0] sm:$0xff]
        %v1720 = vld [vmem:[#allocation10 + $0x6b8] sm:$0xff]
        %v1721 = vld [vmem:[#allocation10 + $0x6c0] sm:$0xff]
        %v1722 = vld [vmem:[#allocation10 + $0x6c8] sm:$0xff]
        %v1723 = vld [vmem:[#allocation10 + $0x6d0] sm:$0xff]
        %v1724 = vld [vmem:[#allocation10 + $0x6d8] sm:$0xff]
        %v1725 = vld [vmem:[#allocation10 + $0x6e0] sm:$0xff]
        %v1726 = vld [vmem:[#allocation10 + $0x6e8] sm:$0xff]
        %v1727 = vld [vmem:[#allocation10 + $0x6f0] sm:$0xff]
        %v1728 = vld [vmem:[#allocation10 + $0x6f8] sm:$0xff]
        %v1729 = vld [vmem:[#allocation10 + $0x700] sm:$0xff]
        %v1730 = vld [vmem:[#allocation10 + $0x708] sm:$0xff]
        %v1731 = vld [vmem:[#allocation10 + $0x710] sm:$0xff]
        %v1732 = vld [vmem:[#allocation10 + $0x718] sm:$0xff]
        %v1733 = vld [vmem:[#allocation10 + $0x720] sm:$0xff]
        %v1734 = vld [vmem:[#allocation10 + $0x728] sm:$0xff]
        %v1735 = vld [vmem:[#allocation10 + $0x730] sm:$0xff]
        %v1736 = vld [vmem:[#allocation10 + $0x738] sm:$0xff]
        %v1737 = vld [vmem:[#allocation10 + $0x740] sm:$0xff]
        %v1738 = vld [vmem:[#allocation10 + $0x748] sm:$0xff]
        %v1739 = vld [vmem:[#allocation10 + $0x750] sm:$0xff]
        %v1740 = vld [vmem:[#allocation10 + $0x758] sm:$0xff]
        %v1741 = vld [vmem:[#allocation10 + $0x760] sm:$0xff]
        %v1742 = vld [vmem:[#allocation10 + $0x768] sm:$0xff]
        %v1743 = vld [vmem:[#allocation10 + $0x770] sm:$0xff]
        %v1744 = vld [vmem:[#allocation10 + $0x778] sm:$0xff]
        %v1745 = vld [vmem:[#allocation10 + $0x780] sm:$0xff]
        %v1746 = vld [vmem:[#allocation10 + $0x788] sm:$0xff]
        %v1747 = vld [vmem:[#allocation10 + $0x790] sm:$0xff]
        %v1748 = vld [vmem:[#allocation10 + $0x798] sm:$0xff]
        %v1749 = vld [vmem:[#allocation10 + $0x7a0] sm:$0xff]
        %v1750 = vld [vmem:[#allocation10 + $0x7a8] sm:$0xff]
        %v1751 = vld [vmem:[#allocation10 + $0x7b0] sm:$0xff]
        %v1752 = vld [vmem:[#allocation10 + $0x7b8] sm:$0xff]
        %v1753 = vld [vmem:[#allocation10 + $0x7c0] sm:$0xff]
        %v1754 = vld [vmem:[#allocation10 + $0x7c8] sm:$0xff]
        %v1755 = vld [vmem:[#allocation10 + $0x7d0] sm:$0xff]
        %v1756 = vld [vmem:[#allocation10 + $0x7d8] sm:$0xff]
        %v1757 = vld [vmem:[#allocation10 + $0x7e0] sm:$0xff]
        %v1758 = vld [vmem:[#allocation10 + $0x7e8] sm:$0xff]
        %v1759 = vld [vmem:[#allocation10 + $0x7f0] sm:$0xff]
        %v1760 = vld [vmem:[#allocation10 + $0x7f8] sm:$0xff]
        %v1761 = vld [vmem:[%s6] sm:$0xff]
        %v1763 = vlaneseq
        %v1764 = vshrl.u32 %v1763, 7
        %v1765 = vsub.s32 0, %v1764
        %v1766 = vrot.slane %v1761, %v1765
        %v1767 = vlaneseq
        %v1768 = vshrl.u32 %v1767, 7
        %v1769 = vsub.s32 1, %v1768
        %v1770 = vrot.slane %v1761, %v1769
        %v1771 = vlaneseq
        %v1772 = vshrl.u32 %v1771, 7
        %v1773 = vsub.s32 2, %v1772
        %v1774 = vrot.slane %v1761, %v1773
        %v1775 = vlaneseq
        %v1776 = vshrl.u32 %v1775, 7
        %v1777 = vsub.s32 3, %v1776
        %v1778 = vrot.slane %v1761, %v1777
        %v1779 = vlaneseq
        %v1780 = vshrl.u32 %v1779, 7
        %v1781 = vsub.s32 4, %v1780
        %v1782 = vrot.slane %v1761, %v1781
        %v1783 = vlaneseq
        %v1784 = vshrl.u32 %v1783, 7
        %v1785 = vsub.s32 5, %v1784
        %v1786 = vrot.slane %v1761, %v1785
        %v1787 = vlaneseq
        %v1788 = vshrl.u32 %v1787, 7
        %v1789 = vsub.s32 6, %v1788
        %v1790 = vrot.slane %v1761, %v1789
        %v1791 = vlaneseq
        %v1792 = vshrl.u32 %v1791, 7
        %v1793 = vsub.s32 7, %v1792
        %v1794 = vrot.slane %v1761, %v1793
        %v2059 = vunpack.c.l.b16 %v1505
        %v2060 = vunpack.c.h.b16 %v1505
        %v2061 = vunpack.c.l.b16 %v1506
        %v2062 = vunpack.c.h.b16 %v1506
        %v2063 = vunpack.c.l.b16 %v1507
        %v2064 = vunpack.c.h.b16 %v1507
        %v2065 = vunpack.c.l.b16 %v1508
        %v2066 = vunpack.c.h.b16 %v1508
        %v2067 = vunpack.c.l.b16 %v1509
        %v2068 = vunpack.c.h.b16 %v1509
        %v2069 = vunpack.c.l.b16 %v1510
        %v2070 = vunpack.c.h.b16 %v1510
        %v2071 = vunpack.c.l.b16 %v1511
        %v2072 = vunpack.c.h.b16 %v1511
        %v2073 = vunpack.c.l.b16 %v1512
        %v2074 = vunpack.c.h.b16 %v1512
        %v2075 = vunpack.c.l.b16 %v1513
        %v2076 = vunpack.c.h.b16 %v1513
        %v2077 = vunpack.c.l.b16 %v1514
        %v2078 = vunpack.c.h.b16 %v1514
        %v2079 = vunpack.c.l.b16 %v1515
        %v2080 = vunpack.c.h.b16 %v1515
        %v2081 = vunpack.c.l.b16 %v1516
        %v2082 = vunpack.c.h.b16 %v1516
        %v2083 = vunpack.c.l.b16 %v1517
        %v2084 = vunpack.c.h.b16 %v1517
        %v2085 = vunpack.c.l.b16 %v1518
        %v2086 = vunpack.c.h.b16 %v1518
        %v2087 = vunpack.c.l.b16 %v1519
        %v2088 = vunpack.c.h.b16 %v1519
        %v2089 = vunpack.c.l.b16 %v1520
        %v2090 = vunpack.c.h.b16 %v1520
        %v2091 = vunpack.c.l.b16 %v1521
        %v2092 = vunpack.c.h.b16 %v1521
        %v2093 = vunpack.c.l.b16 %v1522
        %v2094 = vunpack.c.h.b16 %v1522
        %v2095 = vunpack.c.l.b16 %v1523
        %v2096 = vunpack.c.h.b16 %v1523
        %v2097 = vunpack.c.l.b16 %v1524
        %v2098 = vunpack.c.h.b16 %v1524
        %v2099 = vunpack.c.l.b16 %v1525
        %v2100 = vunpack.c.h.b16 %v1525
        %v2101 = vunpack.c.l.b16 %v1526
        %v2102 = vunpack.c.h.b16 %v1526
        %v2103 = vunpack.c.l.b16 %v1527
        %v2104 = vunpack.c.h.b16 %v1527
        %v2105 = vunpack.c.l.b16 %v1528
        %v2106 = vunpack.c.h.b16 %v1528
        %v2107 = vunpack.c.l.b16 %v1529
        %v2108 = vunpack.c.h.b16 %v1529
        %v2109 = vunpack.c.l.b16 %v1530
        %v2110 = vunpack.c.h.b16 %v1530
        %v2111 = vunpack.c.l.b16 %v1531
        %v2112 = vunpack.c.h.b16 %v1531
        %v2113 = vunpack.c.l.b16 %v1532
        %v2114 = vunpack.c.h.b16 %v1532
        %v2115 = vunpack.c.l.b16 %v1533
        %v2116 = vunpack.c.h.b16 %v1533
        %v2117 = vunpack.c.l.b16 %v1534
        %v2118 = vunpack.c.h.b16 %v1534
        %v2119 = vunpack.c.l.b16 %v1535
        %v2120 = vunpack.c.h.b16 %v1535
        %v2121 = vunpack.c.l.b16 %v1536
        %v2122 = vunpack.c.h.b16 %v1536
        %v2123 = vunpack.c.l.b16 %v1537
        %v2124 = vunpack.c.h.b16 %v1537
        %v2125 = vunpack.c.l.b16 %v1538
        %v2126 = vunpack.c.h.b16 %v1538
        %v2127 = vunpack.c.l.b16 %v1539
        %v2128 = vunpack.c.h.b16 %v1539
        %v2129 = vunpack.c.l.b16 %v1540
        %v2130 = vunpack.c.h.b16 %v1540
        %v2131 = vunpack.c.l.b16 %v1541
        %v2132 = vunpack.c.h.b16 %v1541
        %v2133 = vunpack.c.l.b16 %v1542
        %v2134 = vunpack.c.h.b16 %v1542
        %v2135 = vunpack.c.l.b16 %v1543
        %v2136 = vunpack.c.h.b16 %v1543
        %v2137 = vunpack.c.l.b16 %v1544
        %v2138 = vunpack.c.h.b16 %v1544
        %v2139 = vunpack.c.l.b16 %v1545
        %v2140 = vunpack.c.h.b16 %v1545
        %v2141 = vunpack.c.l.b16 %v1546
        %v2142 = vunpack.c.h.b16 %v1546
        %v2143 = vunpack.c.l.b16 %v1547
        %v2144 = vunpack.c.h.b16 %v1547
        %v2145 = vunpack.c.l.b16 %v1548
        %v2146 = vunpack.c.h.b16 %v1548
        %v2147 = vunpack.c.l.b16 %v1549
        %v2148 = vunpack.c.h.b16 %v1549
        %v2149 = vunpack.c.l.b16 %v1550
        %v2150 = vunpack.c.h.b16 %v1550
        %v2151 = vunpack.c.l.b16 %v1551
        %v2152 = vunpack.c.h.b16 %v1551
        %v2153 = vunpack.c.l.b16 %v1552
        %v2154 = vunpack.c.h.b16 %v1552
        %v2155 = vunpack.c.l.b16 %v1553
        %v2156 = vunpack.c.h.b16 %v1553
        %v2157 = vunpack.c.l.b16 %v1554
        %v2158 = vunpack.c.h.b16 %v1554
        %v2159 = vunpack.c.l.b16 %v1555
        %v2160 = vunpack.c.h.b16 %v1555
        %v2161 = vunpack.c.l.b16 %v1556
        %v2162 = vunpack.c.h.b16 %v1556
        %v2163 = vunpack.c.l.b16 %v1557
        %v2164 = vunpack.c.h.b16 %v1557
        %v2165 = vunpack.c.l.b16 %v1558
        %v2166 = vunpack.c.h.b16 %v1558
        %v2167 = vunpack.c.l.b16 %v1559
        %v2168 = vunpack.c.h.b16 %v1559
        %v2169 = vunpack.c.l.b16 %v1560
        %v2170 = vunpack.c.h.b16 %v1560
        %v2171 = vunpack.c.l.b16 %v1561
        %v2172 = vunpack.c.h.b16 %v1561
        %v2173 = vunpack.c.l.b16 %v1562
        %v2174 = vunpack.c.h.b16 %v1562
        %v2175 = vunpack.c.l.b16 %v1563
        %v2176 = vunpack.c.h.b16 %v1563
        %v2177 = vunpack.c.l.b16 %v1564
        %v2178 = vunpack.c.h.b16 %v1564
        %v2179 = vunpack.c.l.b16 %v1565
        %v2180 = vunpack.c.h.b16 %v1565
        %v2181 = vunpack.c.l.b16 %v1566
        %v2182 = vunpack.c.h.b16 %v1566
        %v2183 = vunpack.c.l.b16 %v1567
        %v2184 = vunpack.c.h.b16 %v1567
        %v2185 = vunpack.c.l.b16 %v1568
        %v2186 = vunpack.c.h.b16 %v1568
        %v2187 = vunpack.c.l.b16 %v1569
        %v2188 = vunpack.c.h.b16 %v1569
        %v2189 = vunpack.c.l.b16 %v1570
        %v2190 = vunpack.c.h.b16 %v1570
        %v2191 = vunpack.c.l.b16 %v1571
        %v2192 = vunpack.c.h.b16 %v1571
        %v2193 = vunpack.c.l.b16 %v1572
        %v2194 = vunpack.c.h.b16 %v1572
        %v2195 = vunpack.c.l.b16 %v1573
        %v2196 = vunpack.c.h.b16 %v1573
        %v2197 = vunpack.c.l.b16 %v1574
        %v2198 = vunpack.c.h.b16 %v1574
        %v2199 = vunpack.c.l.b16 %v1575
        %v2200 = vunpack.c.h.b16 %v1575
        %v2201 = vunpack.c.l.b16 %v1576
        %v2202 = vunpack.c.h.b16 %v1576
        %v2203 = vunpack.c.l.b16 %v1577
        %v2204 = vunpack.c.h.b16 %v1577
        %v2205 = vunpack.c.l.b16 %v1578
        %v2206 = vunpack.c.h.b16 %v1578
        %v2207 = vunpack.c.l.b16 %v1579
        %v2208 = vunpack.c.h.b16 %v1579
        %v2209 = vunpack.c.l.b16 %v1580
        %v2210 = vunpack.c.h.b16 %v1580
        %v2211 = vunpack.c.l.b16 %v1581
        %v2212 = vunpack.c.h.b16 %v1581
        %v2213 = vunpack.c.l.b16 %v1582
        %v2214 = vunpack.c.h.b16 %v1582
        %v2215 = vunpack.c.l.b16 %v1583
        %v2216 = vunpack.c.h.b16 %v1583
        %v2217 = vunpack.c.l.b16 %v1584
        %v2218 = vunpack.c.h.b16 %v1584
        %v2219 = vunpack.c.l.b16 %v1585
        %v2220 = vunpack.c.h.b16 %v1585
        %v2221 = vunpack.c.l.b16 %v1586
        %v2222 = vunpack.c.h.b16 %v1586
        %v2223 = vunpack.c.l.b16 %v1587
        %v2224 = vunpack.c.h.b16 %v1587
        %v2225 = vunpack.c.l.b16 %v1588
        %v2226 = vunpack.c.h.b16 %v1588
        %v2227 = vunpack.c.l.b16 %v1589
        %v2228 = vunpack.c.h.b16 %v1589
        %v2229 = vunpack.c.l.b16 %v1590
        %v2230 = vunpack.c.h.b16 %v1590
        %v2231 = vunpack.c.l.b16 %v1591
        %v2232 = vunpack.c.h.b16 %v1591
        %v2233 = vunpack.c.l.b16 %v1592
        %v2234 = vunpack.c.h.b16 %v1592
        %v2235 = vunpack.c.l.b16 %v1593
        %v2236 = vunpack.c.h.b16 %v1593
        %v2237 = vunpack.c.l.b16 %v1594
        %v2238 = vunpack.c.h.b16 %v1594
        %v2239 = vunpack.c.l.b16 %v1595
        %v2240 = vunpack.c.h.b16 %v1595
        %v2241 = vunpack.c.l.b16 %v1596
        %v2242 = vunpack.c.h.b16 %v1596
        %v2243 = vunpack.c.l.b16 %v1597
        %v2244 = vunpack.c.h.b16 %v1597
        %v2245 = vunpack.c.l.b16 %v1598
        %v2246 = vunpack.c.h.b16 %v1598
        %v2247 = vunpack.c.l.b16 %v1599
        %v2248 = vunpack.c.h.b16 %v1599
        %v2249 = vunpack.c.l.b16 %v1600
        %v2250 = vunpack.c.h.b16 %v1600
        %v2251 = vunpack.c.l.b16 %v1601
        %v2252 = vunpack.c.h.b16 %v1601
        %v2253 = vunpack.c.l.b16 %v1602
        %v2254 = vunpack.c.h.b16 %v1602
        %v2255 = vunpack.c.l.b16 %v1603
        %v2256 = vunpack.c.h.b16 %v1603
        %v2257 = vunpack.c.l.b16 %v1604
        %v2258 = vunpack.c.h.b16 %v1604
        %v2259 = vunpack.c.l.b16 %v1605
        %v2260 = vunpack.c.h.b16 %v1605
        %v2261 = vunpack.c.l.b16 %v1606
        %v2262 = vunpack.c.h.b16 %v1606
        %v2263 = vunpack.c.l.b16 %v1607
        %v2264 = vunpack.c.h.b16 %v1607
        %v2265 = vunpack.c.l.b16 %v1608
        %v2266 = vunpack.c.h.b16 %v1608
        %v2267 = vunpack.c.l.b16 %v1609
        %v2268 = vunpack.c.h.b16 %v1609
        %v2269 = vunpack.c.l.b16 %v1610
        %v2270 = vunpack.c.h.b16 %v1610
        %v2271 = vunpack.c.l.b16 %v1611
        %v2272 = vunpack.c.h.b16 %v1611
        %v2273 = vunpack.c.l.b16 %v1612
        %v2274 = vunpack.c.h.b16 %v1612
        %v2275 = vunpack.c.l.b16 %v1613
        %v2276 = vunpack.c.h.b16 %v1613
        %v2277 = vunpack.c.l.b16 %v1614
        %v2278 = vunpack.c.h.b16 %v1614
        %v2279 = vunpack.c.l.b16 %v1615
        %v2280 = vunpack.c.h.b16 %v1615
        %v2281 = vunpack.c.l.b16 %v1616
        %v2282 = vunpack.c.h.b16 %v1616
        %v2283 = vunpack.c.l.b16 %v1617
        %v2284 = vunpack.c.h.b16 %v1617
        %v2285 = vunpack.c.l.b16 %v1618
        %v2286 = vunpack.c.h.b16 %v1618
        %v2287 = vunpack.c.l.b16 %v1619
        %v2288 = vunpack.c.h.b16 %v1619
        %v2289 = vunpack.c.l.b16 %v1620
        %v2290 = vunpack.c.h.b16 %v1620
        %v2291 = vunpack.c.l.b16 %v1621
        %v2292 = vunpack.c.h.b16 %v1621
        %v2293 = vunpack.c.l.b16 %v1622
        %v2294 = vunpack.c.h.b16 %v1622
        %v2295 = vunpack.c.l.b16 %v1623
        %v2296 = vunpack.c.h.b16 %v1623
        %v2297 = vunpack.c.l.b16 %v1624
        %v2298 = vunpack.c.h.b16 %v1624
        %v2299 = vunpack.c.l.b16 %v1625
        %v2300 = vunpack.c.h.b16 %v1625
        %v2301 = vunpack.c.l.b16 %v1626
        %v2302 = vunpack.c.h.b16 %v1626
        %v2303 = vunpack.c.l.b16 %v1627
        %v2304 = vunpack.c.h.b16 %v1627
        %v2305 = vunpack.c.l.b16 %v1628
        %v2306 = vunpack.c.h.b16 %v1628
        %v2307 = vunpack.c.l.b16 %v1629
        %v2308 = vunpack.c.h.b16 %v1629
        %v2309 = vunpack.c.l.b16 %v1630
        %v2310 = vunpack.c.h.b16 %v1630
        %v2311 = vunpack.c.l.b16 %v1631
        %v2312 = vunpack.c.h.b16 %v1631
        %v2313 = vunpack.c.l.b16 %v1632
        %v2314 = vunpack.c.h.b16 %v1632
        %v2315 = vunpack.c.l.b16 %v1633
        %v2316 = vunpack.c.h.b16 %v1633
        %v2317 = vunpack.c.l.b16 %v1634
        %v2318 = vunpack.c.h.b16 %v1634
        %v2319 = vunpack.c.l.b16 %v1635
        %v2320 = vunpack.c.h.b16 %v1635
        %v2321 = vunpack.c.l.b16 %v1636
        %v2322 = vunpack.c.h.b16 %v1636
        %v2323 = vunpack.c.l.b16 %v1637
        %v2324 = vunpack.c.h.b16 %v1637
        %v2325 = vunpack.c.l.b16 %v1638
        %v2326 = vunpack.c.h.b16 %v1638
        %v2327 = vunpack.c.l.b16 %v1639
        %v2328 = vunpack.c.h.b16 %v1639
        %v2329 = vunpack.c.l.b16 %v1640
        %v2330 = vunpack.c.h.b16 %v1640
        %v2331 = vunpack.c.l.b16 %v1641
        %v2332 = vunpack.c.h.b16 %v1641
        %v2333 = vunpack.c.l.b16 %v1642
        %v2334 = vunpack.c.h.b16 %v1642
        %v2335 = vunpack.c.l.b16 %v1643
        %v2336 = vunpack.c.h.b16 %v1643
        %v2337 = vunpack.c.l.b16 %v1644
        %v2338 = vunpack.c.h.b16 %v1644
        %v2339 = vunpack.c.l.b16 %v1645
        %v2340 = vunpack.c.h.b16 %v1645
        %v2341 = vunpack.c.l.b16 %v1646
        %v2342 = vunpack.c.h.b16 %v1646
        %v2343 = vunpack.c.l.b16 %v1647
        %v2344 = vunpack.c.h.b16 %v1647
        %v2345 = vunpack.c.l.b16 %v1648
        %v2346 = vunpack.c.h.b16 %v1648
        %v2347 = vunpack.c.l.b16 %v1649
        %v2348 = vunpack.c.h.b16 %v1649
        %v2349 = vunpack.c.l.b16 %v1650
        %v2350 = vunpack.c.h.b16 %v1650
        %v2351 = vunpack.c.l.b16 %v1651
        %v2352 = vunpack.c.h.b16 %v1651
        %v2353 = vunpack.c.l.b16 %v1652
        %v2354 = vunpack.c.h.b16 %v1652
        %v2355 = vunpack.c.l.b16 %v1653
        %v2356 = vunpack.c.h.b16 %v1653
        %v2357 = vunpack.c.l.b16 %v1654
        %v2358 = vunpack.c.h.b16 %v1654
        %v2359 = vunpack.c.l.b16 %v1655
        %v2360 = vunpack.c.h.b16 %v1655
        %v2361 = vunpack.c.l.b16 %v1656
        %v2362 = vunpack.c.h.b16 %v1656
        %v2363 = vunpack.c.l.b16 %v1657
        %v2364 = vunpack.c.h.b16 %v1657
        %v2365 = vunpack.c.l.b16 %v1658
        %v2366 = vunpack.c.h.b16 %v1658
        %v2367 = vunpack.c.l.b16 %v1659
        %v2368 = vunpack.c.h.b16 %v1659
        %v2369 = vunpack.c.l.b16 %v1660
        %v2370 = vunpack.c.h.b16 %v1660
        %v2371 = vunpack.c.l.b16 %v1661
        %v2372 = vunpack.c.h.b16 %v1661
        %v2373 = vunpack.c.l.b16 %v1662
        %v2374 = vunpack.c.h.b16 %v1662
        %v2375 = vunpack.c.l.b16 %v1663
        %v2376 = vunpack.c.h.b16 %v1663
        %v2377 = vunpack.c.l.b16 %v1664
        %v2378 = vunpack.c.h.b16 %v1664
        %v2379 = vunpack.c.l.b16 %v1665
        %v2380 = vunpack.c.h.b16 %v1665
        %v2381 = vunpack.c.l.b16 %v1666
        %v2382 = vunpack.c.h.b16 %v1666
        %v2383 = vunpack.c.l.b16 %v1667
        %v2384 = vunpack.c.h.b16 %v1667
        %v2385 = vunpack.c.l.b16 %v1668
        %v2386 = vunpack.c.h.b16 %v1668
        %v2387 = vunpack.c.l.b16 %v1669
        %v2388 = vunpack.c.h.b16 %v1669
        %v2389 = vunpack.c.l.b16 %v1670
        %v2390 = vunpack.c.h.b16 %v1670
        %v2391 = vunpack.c.l.b16 %v1671
        %v2392 = vunpack.c.h.b16 %v1671
        %v2393 = vunpack.c.l.b16 %v1672
        %v2394 = vunpack.c.h.b16 %v1672
        %v2395 = vunpack.c.l.b16 %v1673
        %v2396 = vunpack.c.h.b16 %v1673
        %v2397 = vunpack.c.l.b16 %v1674
        %v2398 = vunpack.c.h.b16 %v1674
        %v2399 = vunpack.c.l.b16 %v1675
        %v2400 = vunpack.c.h.b16 %v1675
        %v2401 = vunpack.c.l.b16 %v1676
        %v2402 = vunpack.c.h.b16 %v1676
        %v2403 = vunpack.c.l.b16 %v1677
        %v2404 = vunpack.c.h.b16 %v1677
        %v2405 = vunpack.c.l.b16 %v1678
        %v2406 = vunpack.c.h.b16 %v1678
        %v2407 = vunpack.c.l.b16 %v1679
        %v2408 = vunpack.c.h.b16 %v1679
        %v2409 = vunpack.c.l.b16 %v1680
        %v2410 = vunpack.c.h.b16 %v1680
        %v2411 = vunpack.c.l.b16 %v1681
        %v2412 = vunpack.c.h.b16 %v1681
        %v2413 = vunpack.c.l.b16 %v1682
        %v2414 = vunpack.c.h.b16 %v1682
        %v2415 = vunpack.c.l.b16 %v1683
        %v2416 = vunpack.c.h.b16 %v1683
        %v2417 = vunpack.c.l.b16 %v1684
        %v2418 = vunpack.c.h.b16 %v1684
        %v2419 = vunpack.c.l.b16 %v1685
        %v2420 = vunpack.c.h.b16 %v1685
        %v2421 = vunpack.c.l.b16 %v1686
        %v2422 = vunpack.c.h.b16 %v1686
        %v2423 = vunpack.c.l.b16 %v1687
        %v2424 = vunpack.c.h.b16 %v1687
        %v2425 = vunpack.c.l.b16 %v1688
        %v2426 = vunpack.c.h.b16 %v1688
        %v2427 = vunpack.c.l.b16 %v1689
        %v2428 = vunpack.c.h.b16 %v1689
        %v2429 = vunpack.c.l.b16 %v1690
        %v2430 = vunpack.c.h.b16 %v1690
        %v2431 = vunpack.c.l.b16 %v1691
        %v2432 = vunpack.c.h.b16 %v1691
        %v2433 = vunpack.c.l.b16 %v1692
        %v2434 = vunpack.c.h.b16 %v1692
        %v2435 = vunpack.c.l.b16 %v1693
        %v2436 = vunpack.c.h.b16 %v1693
        %v2437 = vunpack.c.l.b16 %v1694
        %v2438 = vunpack.c.h.b16 %v1694
        %v2439 = vunpack.c.l.b16 %v1695
        %v2440 = vunpack.c.h.b16 %v1695
        %v2441 = vunpack.c.l.b16 %v1696
        %v2442 = vunpack.c.h.b16 %v1696
        %v2443 = vunpack.c.l.b16 %v1697
        %v2444 = vunpack.c.h.b16 %v1697
        %v2445 = vunpack.c.l.b16 %v1698
        %v2446 = vunpack.c.h.b16 %v1698
        %v2447 = vunpack.c.l.b16 %v1699
        %v2448 = vunpack.c.h.b16 %v1699
        %v2449 = vunpack.c.l.b16 %v1700
        %v2450 = vunpack.c.h.b16 %v1700
        %v2451 = vunpack.c.l.b16 %v1701
        %v2452 = vunpack.c.h.b16 %v1701
        %v2453 = vunpack.c.l.b16 %v1702
        %v2454 = vunpack.c.h.b16 %v1702
        %v2455 = vunpack.c.l.b16 %v1703
        %v2456 = vunpack.c.h.b16 %v1703
        %v2457 = vunpack.c.l.b16 %v1704
        %v2458 = vunpack.c.h.b16 %v1704
        %v2459 = vunpack.c.l.b16 %v1705
        %v2460 = vunpack.c.h.b16 %v1705
        %v2461 = vunpack.c.l.b16 %v1706
        %v2462 = vunpack.c.h.b16 %v1706
        %v2463 = vunpack.c.l.b16 %v1707
        %v2464 = vunpack.c.h.b16 %v1707
        %v2465 = vunpack.c.l.b16 %v1708
        %v2466 = vunpack.c.h.b16 %v1708
        %v2467 = vunpack.c.l.b16 %v1709
        %v2468 = vunpack.c.h.b16 %v1709
        %v2469 = vunpack.c.l.b16 %v1710
        %v2470 = vunpack.c.h.b16 %v1710
        %v2471 = vunpack.c.l.b16 %v1711
        %v2472 = vunpack.c.h.b16 %v1711
        %v2473 = vunpack.c.l.b16 %v1712
        %v2474 = vunpack.c.h.b16 %v1712
        %v2475 = vunpack.c.l.b16 %v1713
        %v2476 = vunpack.c.h.b16 %v1713
        %v2477 = vunpack.c.l.b16 %v1714
        %v2478 = vunpack.c.h.b16 %v1714
        %v2479 = vunpack.c.l.b16 %v1715
        %v2480 = vunpack.c.h.b16 %v1715
        %v2481 = vunpack.c.l.b16 %v1716
        %v2482 = vunpack.c.h.b16 %v1716
        %v2483 = vunpack.c.l.b16 %v1717
        %v2484 = vunpack.c.h.b16 %v1717
        %v2485 = vunpack.c.l.b16 %v1718
        %v2486 = vunpack.c.h.b16 %v1718
        %v2487 = vunpack.c.l.b16 %v1719
        %v2488 = vunpack.c.h.b16 %v1719
        %v2489 = vunpack.c.l.b16 %v1720
        %v2490 = vunpack.c.h.b16 %v1720
        %v2491 = vunpack.c.l.b16 %v1721
        %v2492 = vunpack.c.h.b16 %v1721
        %v2493 = vunpack.c.l.b16 %v1722
        %v2494 = vunpack.c.h.b16 %v1722
        %v2495 = vunpack.c.l.b16 %v1723
        %v2496 = vunpack.c.h.b16 %v1723
        %v2497 = vunpack.c.l.b16 %v1724
        %v2498 = vunpack.c.h.b16 %v1724
        %v2499 = vunpack.c.l.b16 %v1725
        %v2500 = vunpack.c.h.b16 %v1725
        %v2501 = vunpack.c.l.b16 %v1726
        %v2502 = vunpack.c.h.b16 %v1726
        %v2503 = vunpack.c.l.b16 %v1727
        %v2504 = vunpack.c.h.b16 %v1727
        %v2505 = vunpack.c.l.b16 %v1728
        %v2506 = vunpack.c.h.b16 %v1728
        %v2507 = vunpack.c.l.b16 %v1729
        %v2508 = vunpack.c.h.b16 %v1729
        %v2509 = vunpack.c.l.b16 %v1730
        %v2510 = vunpack.c.h.b16 %v1730
        %v2511 = vunpack.c.l.b16 %v1731
        %v2512 = vunpack.c.h.b16 %v1731
        %v2513 = vunpack.c.l.b16 %v1732
        %v2514 = vunpack.c.h.b16 %v1732
        %v2515 = vunpack.c.l.b16 %v1733
        %v2516 = vunpack.c.h.b16 %v1733
        %v2517 = vunpack.c.l.b16 %v1734
        %v2518 = vunpack.c.h.b16 %v1734
        %v2519 = vunpack.c.l.b16 %v1735
        %v2520 = vunpack.c.h.b16 %v1735
        %v2521 = vunpack.c.l.b16 %v1736
        %v2522 = vunpack.c.h.b16 %v1736
        %v2523 = vunpack.c.l.b16 %v1737
        %v2524 = vunpack.c.h.b16 %v1737
        %v2525 = vunpack.c.l.b16 %v1738
        %v2526 = vunpack.c.h.b16 %v1738
        %v2527 = vunpack.c.l.b16 %v1739
        %v2528 = vunpack.c.h.b16 %v1739
        %v2529 = vunpack.c.l.b16 %v1740
        %v2530 = vunpack.c.h.b16 %v1740
        %v2531 = vunpack.c.l.b16 %v1741
        %v2532 = vunpack.c.h.b16 %v1741
        %v2533 = vunpack.c.l.b16 %v1742
        %v2534 = vunpack.c.h.b16 %v1742
        %v2535 = vunpack.c.l.b16 %v1743
        %v2536 = vunpack.c.h.b16 %v1743
        %v2537 = vunpack.c.l.b16 %v1744
        %v2538 = vunpack.c.h.b16 %v1744
        %v2539 = vunpack.c.l.b16 %v1745
        %v2540 = vunpack.c.h.b16 %v1745
        %v2541 = vunpack.c.l.b16 %v1746
        %v2542 = vunpack.c.h.b16 %v1746
        %v2543 = vunpack.c.l.b16 %v1747
        %v2544 = vunpack.c.h.b16 %v1747
        %v2545 = vunpack.c.l.b16 %v1748
        %v2546 = vunpack.c.h.b16 %v1748
        %v2547 = vunpack.c.l.b16 %v1749
        %v2548 = vunpack.c.h.b16 %v1749
        %v2549 = vunpack.c.l.b16 %v1750
        %v2550 = vunpack.c.h.b16 %v1750
        %v2551 = vunpack.c.l.b16 %v1751
        %v2552 = vunpack.c.h.b16 %v1751
        %v2553 = vunpack.c.l.b16 %v1752
        %v2554 = vunpack.c.h.b16 %v1752
        %v2555 = vunpack.c.l.b16 %v1753
        %v2556 = vunpack.c.h.b16 %v1753
        %v2557 = vunpack.c.l.b16 %v1754
        %v2558 = vunpack.c.h.b16 %v1754
        %v2559 = vunpack.c.l.b16 %v1755
        %v2560 = vunpack.c.h.b16 %v1755
        %v2561 = vunpack.c.l.b16 %v1756
        %v2562 = vunpack.c.h.b16 %v1756
        %v2563 = vunpack.c.l.b16 %v1757
        %v2564 = vunpack.c.h.b16 %v1757
        %v2565 = vunpack.c.l.b16 %v1758
        %v2566 = vunpack.c.h.b16 %v1758
        %v2567 = vunpack.c.l.b16 %v1759
        %v2568 = vunpack.c.h.b16 %v1759
        %v2569 = vunpack.c.l.b16 %v1760
        %v2570 = vunpack.c.h.b16 %v1760
        %v2571 = vpack.c.b16 %v2067, %v2059
        %v2572 = vpack.c.b16 %v2068, %v2060
        %v2573 = vpack.c.b16 %v2069, %v2061
        %v2574 = vpack.c.b16 %v2070, %v2062
        %v2575 = vpack.c.b16 %v2071, %v2063
        %v2576 = vpack.c.b16 %v2072, %v2064
        %v2577 = vpack.c.b16 %v2073, %v2065
        %v2578 = vpack.c.b16 %v2074, %v2066
        %v2579 = vpack.c.b16 %v2083, %v2075
        %v2580 = vpack.c.b16 %v2084, %v2076
        %v2581 = vpack.c.b16 %v2085, %v2077
        %v2582 = vpack.c.b16 %v2086, %v2078
        %v2583 = vpack.c.b16 %v2087, %v2079
        %v2584 = vpack.c.b16 %v2088, %v2080
        %v2585 = vpack.c.b16 %v2089, %v2081
        %v2586 = vpack.c.b16 %v2090, %v2082
        %v2587 = vpack.c.b16 %v2099, %v2091
        %v2588 = vpack.c.b16 %v2100, %v2092
        %v2589 = vpack.c.b16 %v2101, %v2093
        %v2590 = vpack.c.b16 %v2102, %v2094
        %v2591 = vpack.c.b16 %v2103, %v2095
        %v2592 = vpack.c.b16 %v2104, %v2096
        %v2593 = vpack.c.b16 %v2105, %v2097
        %v2594 = vpack.c.b16 %v2106, %v2098
        %v2595 = vpack.c.b16 %v2115, %v2107
        %v2596 = vpack.c.b16 %v2116, %v2108
        %v2597 = vpack.c.b16 %v2117, %v2109
        %v2598 = vpack.c.b16 %v2118, %v2110
        %v2599 = vpack.c.b16 %v2119, %v2111
        %v2600 = vpack.c.b16 %v2120, %v2112
        %v2601 = vpack.c.b16 %v2121, %v2113
        %v2602 = vpack.c.b16 %v2122, %v2114
        %v2603 = vpack.c.b16 %v2131, %v2123
        %v2604 = vpack.c.b16 %v2132, %v2124
        %v2605 = vpack.c.b16 %v2133, %v2125
        %v2606 = vpack.c.b16 %v2134, %v2126
        %v2607 = vpack.c.b16 %v2135, %v2127
        %v2608 = vpack.c.b16 %v2136, %v2128
        %v2609 = vpack.c.b16 %v2137, %v2129
        %v2610 = vpack.c.b16 %v2138, %v2130
        %v2611 = vpack.c.b16 %v2147, %v2139
        %v2612 = vpack.c.b16 %v2148, %v2140
        %v2613 = vpack.c.b16 %v2149, %v2141
        %v2614 = vpack.c.b16 %v2150, %v2142
        %v2615 = vpack.c.b16 %v2151, %v2143
        %v2616 = vpack.c.b16 %v2152, %v2144
        %v2617 = vpack.c.b16 %v2153, %v2145
        %v2618 = vpack.c.b16 %v2154, %v2146
        %v2619 = vpack.c.b16 %v2163, %v2155
        %v2620 = vpack.c.b16 %v2164, %v2156
        %v2621 = vpack.c.b16 %v2165, %v2157
        %v2622 = vpack.c.b16 %v2166, %v2158
        %v2623 = vpack.c.b16 %v2167, %v2159
        %v2624 = vpack.c.b16 %v2168, %v2160
        %v2625 = vpack.c.b16 %v2169, %v2161
        %v2626 = vpack.c.b16 %v2170, %v2162
        %v2627 = vpack.c.b16 %v2179, %v2171
        %v2628 = vpack.c.b16 %v2180, %v2172
        %v2629 = vpack.c.b16 %v2181, %v2173
        %v2630 = vpack.c.b16 %v2182, %v2174
        %v2631 = vpack.c.b16 %v2183, %v2175
        %v2632 = vpack.c.b16 %v2184, %v2176
        %v2633 = vpack.c.b16 %v2185, %v2177
        %v2634 = vpack.c.b16 %v2186, %v2178
        %v2635 = vpack.c.b16 %v2195, %v2187
        %v2636 = vpack.c.b16 %v2196, %v2188
        %v2637 = vpack.c.b16 %v2197, %v2189
        %v2638 = vpack.c.b16 %v2198, %v2190
        %v2639 = vpack.c.b16 %v2199, %v2191
        %v2640 = vpack.c.b16 %v2200, %v2192
        %v2641 = vpack.c.b16 %v2201, %v2193
        %v2642 = vpack.c.b16 %v2202, %v2194
        %v2643 = vpack.c.b16 %v2211, %v2203
        %v2644 = vpack.c.b16 %v2212, %v2204
        %v2645 = vpack.c.b16 %v2213, %v2205
        %v2646 = vpack.c.b16 %v2214, %v2206
        %v2647 = vpack.c.b16 %v2215, %v2207
        %v2648 = vpack.c.b16 %v2216, %v2208
        %v2649 = vpack.c.b16 %v2217, %v2209
        %v2650 = vpack.c.b16 %v2218, %v2210
        %v2651 = vpack.c.b16 %v2227, %v2219
        %v2652 = vpack.c.b16 %v2228, %v2220
        %v2653 = vpack.c.b16 %v2229, %v2221
        %v2654 = vpack.c.b16 %v2230, %v2222
        %v2655 = vpack.c.b16 %v2231, %v2223
        %v2656 = vpack.c.b16 %v2232, %v2224
        %v2657 = vpack.c.b16 %v2233, %v2225
        %v2658 = vpack.c.b16 %v2234, %v2226
        %v2659 = vpack.c.b16 %v2243, %v2235
        %v2660 = vpack.c.b16 %v2244, %v2236
        %v2661 = vpack.c.b16 %v2245, %v2237
        %v2662 = vpack.c.b16 %v2246, %v2238
        %v2663 = vpack.c.b16 %v2247, %v2239
        %v2664 = vpack.c.b16 %v2248, %v2240
        %v2665 = vpack.c.b16 %v2249, %v2241
        %v2666 = vpack.c.b16 %v2250, %v2242
        %v2667 = vpack.c.b16 %v2259, %v2251
        %v2668 = vpack.c.b16 %v2260, %v2252
        %v2669 = vpack.c.b16 %v2261, %v2253
        %v2670 = vpack.c.b16 %v2262, %v2254
        %v2671 = vpack.c.b16 %v2263, %v2255
        %v2672 = vpack.c.b16 %v2264, %v2256
        %v2673 = vpack.c.b16 %v2265, %v2257
        %v2674 = vpack.c.b16 %v2266, %v2258
        %v2675 = vpack.c.b16 %v2275, %v2267
        %v2676 = vpack.c.b16 %v2276, %v2268
        %v2677 = vpack.c.b16 %v2277, %v2269
        %v2678 = vpack.c.b16 %v2278, %v2270
        %v2679 = vpack.c.b16 %v2279, %v2271
        %v2680 = vpack.c.b16 %v2280, %v2272
        %v2681 = vpack.c.b16 %v2281, %v2273
        %v2682 = vpack.c.b16 %v2282, %v2274
        %v2683 = vpack.c.b16 %v2291, %v2283
        %v2684 = vpack.c.b16 %v2292, %v2284
        %v2685 = vpack.c.b16 %v2293, %v2285
        %v2686 = vpack.c.b16 %v2294, %v2286
        %v2687 = vpack.c.b16 %v2295, %v2287
        %v2688 = vpack.c.b16 %v2296, %v2288
        %v2689 = vpack.c.b16 %v2297, %v2289
        %v2690 = vpack.c.b16 %v2298, %v2290
        %v2691 = vpack.c.b16 %v2307, %v2299
        %v2692 = vpack.c.b16 %v2308, %v2300
        %v2693 = vpack.c.b16 %v2309, %v2301
        %v2694 = vpack.c.b16 %v2310, %v2302
        %v2695 = vpack.c.b16 %v2311, %v2303
        %v2696 = vpack.c.b16 %v2312, %v2304
        %v2697 = vpack.c.b16 %v2313, %v2305
        %v2698 = vpack.c.b16 %v2314, %v2306
        %v2699 = vpack.c.b16 %v2323, %v2315
        %v2700 = vpack.c.b16 %v2324, %v2316
        %v2701 = vpack.c.b16 %v2325, %v2317
        %v2702 = vpack.c.b16 %v2326, %v2318
        %v2703 = vpack.c.b16 %v2327, %v2319
        %v2704 = vpack.c.b16 %v2328, %v2320
        %v2705 = vpack.c.b16 %v2329, %v2321
        %v2706 = vpack.c.b16 %v2330, %v2322
        %v2707 = vpack.c.b16 %v2339, %v2331
        %v2708 = vpack.c.b16 %v2340, %v2332
        %v2709 = vpack.c.b16 %v2341, %v2333
        %v2710 = vpack.c.b16 %v2342, %v2334
        %v2711 = vpack.c.b16 %v2343, %v2335
        %v2712 = vpack.c.b16 %v2344, %v2336
        %v2713 = vpack.c.b16 %v2345, %v2337
        %v2714 = vpack.c.b16 %v2346, %v2338
        %v2715 = vpack.c.b16 %v2355, %v2347
        %v2716 = vpack.c.b16 %v2356, %v2348
        %v2717 = vpack.c.b16 %v2357, %v2349
        %v2718 = vpack.c.b16 %v2358, %v2350
        %v2719 = vpack.c.b16 %v2359, %v2351
        %v2720 = vpack.c.b16 %v2360, %v2352
        %v2721 = vpack.c.b16 %v2361, %v2353
        %v2722 = vpack.c.b16 %v2362, %v2354
        %v2723 = vpack.c.b16 %v2371, %v2363
        %v2724 = vpack.c.b16 %v2372, %v2364
        %v2725 = vpack.c.b16 %v2373, %v2365
        %v2726 = vpack.c.b16 %v2374, %v2366
        %v2727 = vpack.c.b16 %v2375, %v2367
        %v2728 = vpack.c.b16 %v2376, %v2368
        %v2729 = vpack.c.b16 %v2377, %v2369
        %v2730 = vpack.c.b16 %v2378, %v2370
        %v2731 = vpack.c.b16 %v2387, %v2379
        %v2732 = vpack.c.b16 %v2388, %v2380
        %v2733 = vpack.c.b16 %v2389, %v2381
        %v2734 = vpack.c.b16 %v2390, %v2382
        %v2735 = vpack.c.b16 %v2391, %v2383
        %v2736 = vpack.c.b16 %v2392, %v2384
        %v2737 = vpack.c.b16 %v2393, %v2385
        %v2738 = vpack.c.b16 %v2394, %v2386
        %v2739 = vpack.c.b16 %v2403, %v2395
        %v2740 = vpack.c.b16 %v2404, %v2396
        %v2741 = vpack.c.b16 %v2405, %v2397
        %v2742 = vpack.c.b16 %v2406, %v2398
        %v2743 = vpack.c.b16 %v2407, %v2399
        %v2744 = vpack.c.b16 %v2408, %v2400
        %v2745 = vpack.c.b16 %v2409, %v2401
        %v2746 = vpack.c.b16 %v2410, %v2402
        %v2747 = vpack.c.b16 %v2419, %v2411
        %v2748 = vpack.c.b16 %v2420, %v2412
        %v2749 = vpack.c.b16 %v2421, %v2413
        %v2750 = vpack.c.b16 %v2422, %v2414
        %v2751 = vpack.c.b16 %v2423, %v2415
        %v2752 = vpack.c.b16 %v2424, %v2416
        %v2753 = vpack.c.b16 %v2425, %v2417
        %v2754 = vpack.c.b16 %v2426, %v2418
        %v2755 = vpack.c.b16 %v2435, %v2427
        %v2756 = vpack.c.b16 %v2436, %v2428
        %v2757 = vpack.c.b16 %v2437, %v2429
        %v2758 = vpack.c.b16 %v2438, %v2430
        %v2759 = vpack.c.b16 %v2439, %v2431
        %v2760 = vpack.c.b16 %v2440, %v2432
        %v2761 = vpack.c.b16 %v2441, %v2433
        %v2762 = vpack.c.b16 %v2442, %v2434
        %v2763 = vpack.c.b16 %v2451, %v2443
        %v2764 = vpack.c.b16 %v2452, %v2444
        %v2765 = vpack.c.b16 %v2453, %v2445
        %v2766 = vpack.c.b16 %v2454, %v2446
        %v2767 = vpack.c.b16 %v2455, %v2447
        %v2768 = vpack.c.b16 %v2456, %v2448
        %v2769 = vpack.c.b16 %v2457, %v2449
        %v2770 = vpack.c.b16 %v2458, %v2450
        %v2771 = vpack.c.b16 %v2467, %v2459
        %v2772 = vpack.c.b16 %v2468, %v2460
        %v2773 = vpack.c.b16 %v2469, %v2461
        %v2774 = vpack.c.b16 %v2470, %v2462
        %v2775 = vpack.c.b16 %v2471, %v2463
        %v2776 = vpack.c.b16 %v2472, %v2464
        %v2777 = vpack.c.b16 %v2473, %v2465
        %v2778 = vpack.c.b16 %v2474, %v2466
        %v2779 = vpack.c.b16 %v2483, %v2475
        %v2780 = vpack.c.b16 %v2484, %v2476
        %v2781 = vpack.c.b16 %v2485, %v2477
        %v2782 = vpack.c.b16 %v2486, %v2478
        %v2783 = vpack.c.b16 %v2487, %v2479
        %v2784 = vpack.c.b16 %v2488, %v2480
        %v2785 = vpack.c.b16 %v2489, %v2481
        %v2786 = vpack.c.b16 %v2490, %v2482
        %v2787 = vpack.c.b16 %v2499, %v2491
        %v2788 = vpack.c.b16 %v2500, %v2492
        %v2789 = vpack.c.b16 %v2501, %v2493
        %v2790 = vpack.c.b16 %v2502, %v2494
        %v2791 = vpack.c.b16 %v2503, %v2495
        %v2792 = vpack.c.b16 %v2504, %v2496
        %v2793 = vpack.c.b16 %v2505, %v2497
        %v2794 = vpack.c.b16 %v2506, %v2498
        %v2795 = vpack.c.b16 %v2515, %v2507
        %v2796 = vpack.c.b16 %v2516, %v2508
        %v2797 = vpack.c.b16 %v2517, %v2509
        %v2798 = vpack.c.b16 %v2518, %v2510
        %v2799 = vpack.c.b16 %v2519, %v2511
        %v2800 = vpack.c.b16 %v2520, %v2512
        %v2801 = vpack.c.b16 %v2521, %v2513
        %v2802 = vpack.c.b16 %v2522, %v2514
        %v2803 = vpack.c.b16 %v2531, %v2523
        %v2804 = vpack.c.b16 %v2532, %v2524
        %v2805 = vpack.c.b16 %v2533, %v2525
        %v2806 = vpack.c.b16 %v2534, %v2526
        %v2807 = vpack.c.b16 %v2535, %v2527
        %v2808 = vpack.c.b16 %v2536, %v2528
        %v2809 = vpack.c.b16 %v2537, %v2529
        %v2810 = vpack.c.b16 %v2538, %v2530
        %v2811 = vpack.c.b16 %v2547, %v2539
        %v2812 = vpack.c.b16 %v2548, %v2540
        %v2813 = vpack.c.b16 %v2549, %v2541
        %v2814 = vpack.c.b16 %v2550, %v2542
        %v2815 = vpack.c.b16 %v2551, %v2543
        %v2816 = vpack.c.b16 %v2552, %v2544
        %v2817 = vpack.c.b16 %v2553, %v2545
        %v2818 = vpack.c.b16 %v2554, %v2546
        %v2819 = vpack.c.b16 %v2563, %v2555
        %v2820 = vpack.c.b16 %v2564, %v2556
        %v2821 = vpack.c.b16 %v2565, %v2557
        %v2822 = vpack.c.b16 %v2566, %v2558
        %v2823 = vpack.c.b16 %v2567, %v2559
        %v2824 = vpack.c.b16 %v2568, %v2560
        %v2825 = vpack.c.b16 %v2569, %v2561
        %v2826 = vpack.c.b16 %v2570, %v2562
        %3083 = vmatprep.subr.bf16.mxu0 %v2572
        %3084 = vmatpush1.bf16.msra.mxu0 %v2571
        %3085 = vmatprep.subr.bf16.mxu0 %v2580
        %3086 = vmatpush1.bf16.msra.mxu0 %v2579
        %3087 = vmatprep.subr.bf16.mxu0 %v2588
        %3088 = vmatpush1.bf16.msra.mxu0 %v2587
        %3089 = vmatprep.subr.bf16.mxu0 %v2596
        %3090 = vmatpush1.bf16.msra.mxu0 %v2595
        %3091 = vmatprep.subr.bf16.mxu0 %v2604
        %3092 = vmatpush1.bf16.msra.mxu0 %v2603
        %3093 = vmatprep.subr.bf16.mxu0 %v2612
        %3094 = vmatpush1.bf16.msra.mxu0 %v2611
        %3095 = vmatprep.subr.bf16.mxu0 %v2620
        %3096 = vmatpush1.bf16.msra.mxu0 %v2619
        %3097 = vmatprep.subr.bf16.mxu0 %v2628
        %3098 = vmatpush1.bf16.msra.mxu0 %v2627
        %3099 = vmatprep.subr.bf16.mxu0 %v2636
        %3100 = vmatpush1.bf16.msra.mxu0 %v2635
        %3101 = vmatprep.subr.bf16.mxu0 %v2644
        %3102 = vmatpush1.bf16.msra.mxu0 %v2643
        %3103 = vmatprep.subr.bf16.mxu0 %v2652
        %3104 = vmatpush1.bf16.msra.mxu0 %v2651
        %3105 = vmatprep.subr.bf16.mxu0 %v2660
        %3106 = vmatpush1.bf16.msra.mxu0 %v2659
        %3107 = vmatprep.subr.bf16.mxu0 %v2668
        %3108 = vmatpush1.bf16.msra.mxu0 %v2667
        %3109 = vmatprep.subr.bf16.mxu0 %v2676
        %3110 = vmatpush1.bf16.msra.mxu0 %v2675
        %3111 = vmatprep.subr.bf16.mxu0 %v2684
        %3112 = vmatpush1.bf16.msra.mxu0 %v2683
        %3113 = vmatprep.subr.bf16.mxu0 %v2692
        %3114 = vmatpush1.bf16.msra.mxu0 %v2691
        %3115 = vmatprep.mubr.bf16.mxu0 %v1502
        %3116 = vmatmul.mubr.bf16.gmra.mrb[0].mxu0 %v1501
        %v3117 = vpop.f32.mrb[0].mxu0
        %v3118 = vadd.f32 %v1766, %v3117
        %v3119 = vpop.f32.mrb[0].mxu0
        %v3120 = vadd.f32 %v1770, %v3119
        %v3121 = vpop.f32.mrb[0].mxu0
        %v3122 = vadd.f32 %v1766, %v3121
        %v3123 = vpop.f32.mrb[0].mxu0
        %v3124 = vadd.f32 %v1770, %v3123
        %3125 = vdwg.mxu0
        %3126 = vmatprep.subr.bf16.mxu0 %v2700
        %3127 = vmatpush1.bf16.msra.mxu0 %v2699
        %3128 = vmatprep.subr.bf16.mxu0 %v2708
        %3129 = vmatpush1.bf16.msra.mxu0 %v2707
        %3130 = vmatprep.subr.bf16.mxu0 %v2716
        %3131 = vmatpush1.bf16.msra.mxu0 %v2715
        %3132 = vmatprep.subr.bf16.mxu0 %v2724
        %3133 = vmatpush1.bf16.msra.mxu0 %v2723
        %3134 = vmatprep.subr.bf16.mxu0 %v2732
        %3135 = vmatpush1.bf16.msra.mxu0 %v2731
        %3136 = vmatprep.subr.bf16.mxu0 %v2740
        %3137 = vmatpush1.bf16.msra.mxu0 %v2739
        %3138 = vmatprep.subr.bf16.mxu0 %v2748
        %3139 = vmatpush1.bf16.msra.mxu0 %v2747
        %3140 = vmatprep.subr.bf16.mxu0 %v2756
        %3141 = vmatpush1.bf16.msra.mxu0 %v2755
        %3142 = vmatprep.subr.bf16.mxu0 %v2764
        %3143 = vmatpush1.bf16.msra.mxu0 %v2763
        %3144 = vmatprep.subr.bf16.mxu0 %v2772
        %3145 = vmatpush1.bf16.msra.mxu0 %v2771
        %3146 = vmatprep.subr.bf16.mxu0 %v2780
        %3147 = vmatpush1.bf16.msra.mxu0 %v2779
        %3148 = vmatprep.subr.bf16.mxu0 %v2788
        %3149 = vmatpush1.bf16.msra.mxu0 %v2787
        %3150 = vmatprep.subr.bf16.mxu0 %v2796
        %3151 = vmatpush1.bf16.msra.mxu0 %v2795
        %3152 = vmatprep.subr.bf16.mxu0 %v2804
        %3153 = vmatpush1.bf16.msra.mxu0 %v2803
        %3154 = vmatprep.subr.bf16.mxu0 %v2812
        %3155 = vmatpush1.bf16.msra.mxu0 %v2811
        %3156 = vmatprep.subr.bf16.mxu0 %v2820
        %3157 = vmatpush1.bf16.msra.mxu0 %v2819
        %3158 = vmatprep.mubr.bf16.mxu0 %v1504
        %3159 = vmatmul.mubr.bf16.gmra.mrb[0].mxu0 %v1503
        %v3160 = vpop.f32.mrb[0].mxu0
        %v3161 = vadd.f32 %v3118, %v3160
        %v3162 = vpop.f32.mrb[0].mxu0
        %v3163 = vadd.f32 %v3120, %v3162
        %v3164 = vpop.f32.mrb[0].mxu0
        %v3165 = vadd.f32 %v3122, %v3164
        %v3166 = vpop.f32.mrb[0].mxu0
        %v3167 = vadd.f32 %v3124, %v3166
        %3168 = vdwg.mxu0
        %3169 = vmatprep.subr.bf16.mxu0 %v2574
        %3170 = vmatpush1.bf16.msra.mxu0 %v2573
        %3171 = vmatprep.subr.bf16.mxu0 %v2582
        %3172 = vmatpush1.bf16.msra.mxu0 %v2581
        %3173 = vmatprep.subr.bf16.mxu0 %v2590
        %3174 = vmatpush1.bf16.msra.mxu0 %v2589
        %3175 = vmatprep.subr.bf16.mxu0 %v2598
        %3176 = vmatpush1.bf16.msra.mxu0 %v2597
        %3177 = vmatprep.subr.bf16.mxu0 %v2606
        %3178 = vmatpush1.bf16.msra.mxu0 %v2605
        %3179 = vmatprep.subr.bf16.mxu0 %v2614
        %3180 = vmatpush1.bf16.msra.mxu0 %v2613
        %3181 = vmatprep.subr.bf16.mxu0 %v2622
        %3182 = vmatpush1.bf16.msra.mxu0 %v2621
        %3183 = vmatprep.subr.bf16.mxu0 %v2630
        %3184 = vmatpush1.bf16.msra.mxu0 %v2629
        %3185 = vmatprep.subr.bf16.mxu0 %v2638
        %3186 = vmatpush1.bf16.msra.mxu0 %v2637
        %3187 = vmatprep.subr.bf16.mxu0 %v2646
        %3188 = vmatpush1.bf16.msra.mxu0 %v2645
        %3189 = vmatprep.subr.bf16.mxu0 %v2654
        %3190 = vmatpush1.bf16.msra.mxu0 %v2653
        %3191 = vmatprep.subr.bf16.mxu0 %v2662
        %3192 = vmatpush1.bf16.msra.mxu0 %v2661
        %3193 = vmatprep.subr.bf16.mxu0 %v2670
        %3194 = vmatpush1.bf16.msra.mxu0 %v2669
        %3195 = vmatprep.subr.bf16.mxu0 %v2678
        %3196 = vmatpush1.bf16.msra.mxu0 %v2677
        %3197 = vmatprep.subr.bf16.mxu0 %v2686
        %3198 = vmatpush1.bf16.msra.mxu0 %v2685
        %3199 = vmatprep.subr.bf16.mxu0 %v2694
        %3200 = vmatpush1.bf16.msra.mxu0 %v2693
        %3201 = vmatprep.mubr.bf16.mxu0 %v1502
        %3202 = vmatmul.mubr.bf16.gmra.mrb[0].mxu0 %v1501
        %v3203 = vpop.f32.mrb[0].mxu0
        %v3204 = vadd.f32 %v1774, %v3203
        %v3205 = vpop.f32.mrb[0].mxu0
        %v3206 = vadd.f32 %v1778, %v3205
        %v3207 = vpop.f32.mrb[0].mxu0
        %v3208 = vadd.f32 %v1774, %v3207
        %v3209 = vpop.f32.mrb[0].mxu0
        %v3210 = vadd.f32 %v1778, %v3209
        %3211 = vdwg.mxu0
        %3212 = vmatprep.subr.bf16.mxu0 %v2702
        %3213 = vmatpush1.bf16.msra.mxu0 %v2701
        %3214 = vmatprep.subr.bf16.mxu0 %v2710
        %3215 = vmatpush1.bf16.msra.mxu0 %v2709
        %3216 = vmatprep.subr.bf16.mxu0 %v2718
        %3217 = vmatpush1.bf16.msra.mxu0 %v2717
        %3218 = vmatprep.subr.bf16.mxu0 %v2726
        %3219 = vmatpush1.bf16.msra.mxu0 %v2725
        %3220 = vmatprep.subr.bf16.mxu0 %v2734
        %3221 = vmatpush1.bf16.msra.mxu0 %v2733
        %3222 = vmatprep.subr.bf16.mxu0 %v2742
        %3223 = vmatpush1.bf16.msra.mxu0 %v2741
        %3224 = vmatprep.subr.bf16.mxu0 %v2750
        %3225 = vmatpush1.bf16.msra.mxu0 %v2749
        %3226 = vmatprep.subr.bf16.mxu0 %v2758
        %3227 = vmatpush1.bf16.msra.mxu0 %v2757
        %3228 = vmatprep.subr.bf16.mxu0 %v2766
        %3229 = vmatpush1.bf16.msra.mxu0 %v2765
        %3230 = vmatprep.subr.bf16.mxu0 %v2774
        %3231 = vmatpush1.bf16.msra.mxu0 %v2773
        %3232 = vmatprep.subr.bf16.mxu0 %v2782
        %3233 = vmatpush1.bf16.msra.mxu0 %v2781
        %3234 = vmatprep.subr.bf16.mxu0 %v2790
        %3235 = vmatpush1.bf16.msra.mxu0 %v2789
        %3236 = vmatprep.subr.bf16.mxu0 %v2798
        %3237 = vmatpush1.bf16.msra.mxu0 %v2797
        %3238 = vmatprep.subr.bf16.mxu0 %v2806
        %3239 = vmatpush1.bf16.msra.mxu0 %v2805
        %3240 = vmatprep.subr.bf16.mxu0 %v2814
        %3241 = vmatpush1.bf16.msra.mxu0 %v2813
        %3242 = vmatprep.subr.bf16.mxu0 %v2822
        %3243 = vmatpush1.bf16.msra.mxu0 %v2821
        %3244 = vmatprep.mubr.bf16.mxu0 %v1504
        %3245 = vmatmul.mubr.bf16.gmra.mrb[0].mxu0 %v1503
        %v3246 = vpop.f32.mrb[0].mxu0
        %v3247 = vadd.f32 %v3204, %v3246
        %v3248 = vpop.f32.mrb[0].mxu0
        %v3249 = vadd.f32 %v3206, %v3248
        %v3250 = vpop.f32.mrb[0].mxu0
        %v3251 = vadd.f32 %v3208, %v3250
        %v3252 = vpop.f32.mrb[0].mxu0
        %v3253 = vadd.f32 %v3210, %v3252
        %3254 = vdwg.mxu0
        %3255 = vmatprep.subr.bf16.mxu0 %v2576
        %3256 = vmatpush1.bf16.msra.mxu0 %v2575
        %3257 = vmatprep.subr.bf16.mxu0 %v2584
        %3258 = vmatpush1.bf16.msra.mxu0 %v2583
        %3259 = vmatprep.subr.bf16.mxu0 %v2592
        %3260 = vmatpush1.bf16.msra.mxu0 %v2591
        %3261 = vmatprep.subr.bf16.mxu0 %v2600
        %3262 = vmatpush1.bf16.msra.mxu0 %v2599
        %3263 = vmatprep.subr.bf16.mxu0 %v2608
        %3264 = vmatpush1.bf16.msra.mxu0 %v2607
        %3265 = vmatprep.subr.bf16.mxu0 %v2616
        %3266 = vmatpush1.bf16.msra.mxu0 %v2615
        %3267 = vmatprep.subr.bf16.mxu0 %v2624
        %3268 = vmatpush1.bf16.msra.mxu0 %v2623
        %3269 = vmatprep.subr.bf16.mxu0 %v2632
        %3270 = vmatpush1.bf16.msra.mxu0 %v2631
        %3271 = vmatprep.subr.bf16.mxu0 %v2640
        %3272 = vmatpush1.bf16.msra.mxu0 %v2639
        %3273 = vmatprep.subr.bf16.mxu0 %v2648
        %3274 = vmatpush1.bf16.msra.mxu0 %v2647
        %3275 = vmatprep.subr.bf16.mxu0 %v2656
        %3276 = vmatpush1.bf16.msra.mxu0 %v2655
        %3277 = vmatprep.subr.bf16.mxu0 %v2664
        %3278 = vmatpush1.bf16.msra.mxu0 %v2663
        %3279 = vmatprep.subr.bf16.mxu0 %v2672
        %3280 = vmatpush1.bf16.msra.mxu0 %v2671
        %3281 = vmatprep.subr.bf16.mxu0 %v2680
        %3282 = vmatpush1.bf16.msra.mxu0 %v2679
        %3283 = vmatprep.subr.bf16.mxu0 %v2688
        %3284 = vmatpush1.bf16.msra.mxu0 %v2687
        %3285 = vmatprep.subr.bf16.mxu0 %v2696
        %3286 = vmatpush1.bf16.msra.mxu0 %v2695
        %3287 = vmatprep.mubr.bf16.mxu0 %v1502
        %3288 = vmatmul.mubr.bf16.gmra.mrb[0].mxu0 %v1501
        %v3289 = vpop.f32.mrb[0].mxu0
        %v3290 = vadd.f32 %v1782, %v3289
        %v3291 = vpop.f32.mrb[0].mxu0
        %v3292 = vadd.f32 %v1786, %v3291
        %v3293 = vpop.f32.mrb[0].mxu0
        %v3294 = vadd.f32 %v1782, %v3293
        %v3295 = vpop.f32.mrb[0].mxu0
        %v3296 = vadd.f32 %v1786, %v3295
        %3297 = vdwg.mxu0
        %3298 = vmatprep.subr.bf16.mxu0 %v2704
        %3299 = vmatpush1.bf16.msra.mxu0 %v2703
        %3300 = vmatprep.subr.bf16.mxu0 %v2712
        %3301 = vmatpush1.bf16.msra.mxu0 %v2711
        %3302 = vmatprep.subr.bf16.mxu0 %v2720
        %3303 = vmatpush1.bf16.msra.mxu0 %v2719
        %3304 = vmatprep.subr.bf16.mxu0 %v2728
        %3305 = vmatpush1.bf16.msra.mxu0 %v2727
        %3306 = vmatprep.subr.bf16.mxu0 %v2736
        %3307 = vmatpush1.bf16.msra.mxu0 %v2735
        %3308 = vmatprep.subr.bf16.mxu0 %v2744
        %3309 = vmatpush1.bf16.msra.mxu0 %v2743
        %3310 = vmatprep.subr.bf16.mxu0 %v2752
        %3311 = vmatpush1.bf16.msra.mxu0 %v2751
        %3312 = vmatprep.subr.bf16.mxu0 %v2760
        %3313 = vmatpush1.bf16.msra.mxu0 %v2759
        %3314 = vmatprep.subr.bf16.mxu0 %v2768
        %3315 = vmatpush1.bf16.msra.mxu0 %v2767
        %3316 = vmatprep.subr.bf16.mxu0 %v2776
        %3317 = vmatpush1.bf16.msra.mxu0 %v2775
        %3318 = vmatprep.subr.bf16.mxu0 %v2784
        %3319 = vmatpush1.bf16.msra.mxu0 %v2783
        %3320 = vmatprep.subr.bf16.mxu0 %v2792
        %3321 = vmatpush1.bf16.msra.mxu0 %v2791
        %3322 = vmatprep.subr.bf16.mxu0 %v2800
        %3323 = vmatpush1.bf16.msra.mxu0 %v2799
        %3324 = vmatprep.subr.bf16.mxu0 %v2808
        %3325 = vmatpush1.bf16.msra.mxu0 %v2807
        %3326 = vmatprep.subr.bf16.mxu0 %v2816
        %3327 = vmatpush1.bf16.msra.mxu0 %v2815
        %3328 = vmatprep.subr.bf16.mxu0 %v2824
        %3329 = vmatpush1.bf16.msra.mxu0 %v2823
        %3330 = vmatprep.mubr.bf16.mxu0 %v1504
        %3331 = vmatmul.mubr.bf16.gmra.mrb[0].mxu0 %v1503
        %v3332 = vpop.f32.mrb[0].mxu0
        %v3333 = vadd.f32 %v3290, %v3332
        %v3334 = vpop.f32.mrb[0].mxu0
        %v3335 = vadd.f32 %v3292, %v3334
        %v3336 = vpop.f32.mrb[0].mxu0
        %v3337 = vadd.f32 %v3294, %v3336
        %v3338 = vpop.f32.mrb[0].mxu0
        %v3339 = vadd.f32 %v3296, %v3338
        %3340 = vdwg.mxu0
        %3341 = vmatprep.subr.bf16.mxu0 %v2578
        %3342 = vmatpush1.bf16.msra.mxu0 %v2577
        %3343 = vmatprep.subr.bf16.mxu0 %v2586
        %3344 = vmatpush1.bf16.msra.mxu0 %v2585
        %3345 = vmatprep.subr.bf16.mxu0 %v2594
        %3346 = vmatpush1.bf16.msra.mxu0 %v2593
        %3347 = vmatprep.subr.bf16.mxu0 %v2602
        %3348 = vmatpush1.bf16.msra.mxu0 %v2601
        %3349 = vmatprep.subr.bf16.mxu0 %v2610
        %3350 = vmatpush1.bf16.msra.mxu0 %v2609
        %3351 = vmatprep.subr.bf16.mxu0 %v2618
        %3352 = vmatpush1.bf16.msra.mxu0 %v2617
        %3353 = vmatprep.subr.bf16.mxu0 %v2626
        %3354 = vmatpush1.bf16.msra.mxu0 %v2625
        %3355 = vmatprep.subr.bf16.mxu0 %v2634
        %3356 = vmatpush1.bf16.msra.mxu0 %v2633
        %3357 = vmatprep.subr.bf16.mxu0 %v2642
        %3358 = vmatpush1.bf16.msra.mxu0 %v2641
        %3359 = vmatprep.subr.bf16.mxu0 %v2650
        %3360 = vmatpush1.bf16.msra.mxu0 %v2649
        %3361 = vmatprep.subr.bf16.mxu0 %v2658
        %3362 = vmatpush1.bf16.msra.mxu0 %v2657
        %3363 = vmatprep.subr.bf16.mxu0 %v2666
        %3364 = vmatpush1.bf16.msra.mxu0 %v2665
        %3365 = vmatprep.subr.bf16.mxu0 %v2674
        %3366 = vmatpush1.bf16.msra.mxu0 %v2673
        %3367 = vmatprep.subr.bf16.mxu0 %v2682
        %3368 = vmatpush1.bf16.msra.mxu0 %v2681
        %3369 = vmatprep.subr.bf16.mxu0 %v2690
        %3370 = vmatpush1.bf16.msra.mxu0 %v2689
        %3371 = vmatprep.subr.bf16.mxu0 %v2698
        %3372 = vmatpush1.bf16.msra.mxu0 %v2697
        %3373 = vmatprep.mubr.bf16.mxu0 %v1502
        %3374 = vmatmul.mubr.bf16.gmra.mrb[0].mxu0 %v1501
        %v3375 = vpop.f32.mrb[0].mxu0
        %v3376 = vadd.f32 %v1790, %v3375
        %v3377 = vpop.f32.mrb[0].mxu0
        %v3378 = vadd.f32 %v1794, %v3377
        %v3379 = vpop.f32.mrb[0].mxu0
        %v3380 = vadd.f32 %v1790, %v3379
        %v3381 = vpop.f32.mrb[0].mxu0
        %v3382 = vadd.f32 %v1794, %v3381
        %3383 = vdwg.mxu0
        %3384 = vmatprep.subr.bf16.mxu0 %v2706
        %3385 = vmatpush1.bf16.msra.mxu0 %v2705
        %3386 = vmatprep.subr.bf16.mxu0 %v2714
        %3387 = vmatpush1.bf16.msra.mxu0 %v2713
        %3388 = vmatprep.subr.bf16.mxu0 %v2722
        %3389 = vmatpush1.bf16.msra.mxu0 %v2721
        %3390 = vmatprep.subr.bf16.mxu0 %v2730
        %3391 = vmatpush1.bf16.msra.mxu0 %v2729
        %3392 = vmatprep.subr.bf16.mxu0 %v2738
        %3393 = vmatpush1.bf16.msra.mxu0 %v2737
        %3394 = vmatprep.subr.bf16.mxu0 %v2746
        %3395 = vmatpush1.bf16.msra.mxu0 %v2745
        %3396 = vmatprep.subr.bf16.mxu0 %v2754
        %3397 = vmatpush1.bf16.msra.mxu0 %v2753
        %3398 = vmatprep.subr.bf16.mxu0 %v2762
        %3399 = vmatpush1.bf16.msra.mxu0 %v2761
        %3400 = vmatprep.subr.bf16.mxu0 %v2770
        %3401 = vmatpush1.bf16.msra.mxu0 %v2769
        %3402 = vmatprep.subr.bf16.mxu0 %v2778
        %3403 = vmatpush1.bf16.msra.mxu0 %v2777
        %3404 = vmatprep.subr.bf16.mxu0 %v2786
        %3405 = vmatpush1.bf16.msra.mxu0 %v2785
        %3406 = vmatprep.subr.bf16.mxu0 %v2794
        %3407 = vmatpush1.bf16.msra.mxu0 %v2793
        %3408 = vmatprep.subr.bf16.mxu0 %v2802
        %3409 = vmatpush1.bf16.msra.mxu0 %v2801
        %3410 = vmatprep.subr.bf16.mxu0 %v2810
        %3411 = vmatpush1.bf16.msra.mxu0 %v2809
        %3412 = vmatprep.subr.bf16.mxu0 %v2818
        %3413 = vmatpush1.bf16.msra.mxu0 %v2817
        %3414 = vmatprep.subr.bf16.mxu0 %v2826
        %3415 = vmatpush1.bf16.msra.mxu0 %v2825
        %3416 = vmatprep.mubr.bf16.mxu0 %v1504
        %3417 = vmatmul.mubr.bf16.gmra.mrb[0].mxu0 %v1503
        %v3418 = vpop.f32.mrb[0].mxu0
        %v3419 = vadd.f32 %v3376, %v3418
        %v3420 = vpop.f32.mrb[0].mxu0
        %v3421 = vadd.f32 %v3378, %v3420
        %v3422 = vpop.f32.mrb[0].mxu0
        %v3423 = vadd.f32 %v3380, %v3422
        %v3424 = vpop.f32.mrb[0].mxu0
        %v3425 = vadd.f32 %v3382, %v3424
        %3426 = vdwg.mxu0
        %v3427 = vxor.u32 %v3161, 2147483648
        %v3428 = vxor.u32 %v3163, 2147483648
        %v3429 = vxor.u32 %v3247, 2147483648
        %v3430 = vxor.u32 %v3249, 2147483648
        %v3431 = vxor.u32 %v3333, 2147483648
        %v3432 = vxor.u32 %v3335, 2147483648
        %v3433 = vxor.u32 %v3419, 2147483648
        %v3434 = vxor.u32 %v3421, 2147483648
        %v3435 = vxor.u32 %v3165, 2147483648
        %v3436 = vxor.u32 %v3167, 2147483648
        %v3437 = vxor.u32 %v3251, 2147483648
        %v3438 = vxor.u32 %v3253, 2147483648
        %v3439 = vxor.u32 %v3337, 2147483648
        %v3440 = vxor.u32 %v3339, 2147483648
        %v3441 = vxor.u32 %v3423, 2147483648
        %v3442 = vxor.u32 %v3425, 2147483648
        %v3443 = vmul.f32 %v3427, 1.442695
        %v3444 = vpow.pop %v3443
        %v3445 = vmul.f32 %v3428, 1.442695
        %v3446 = vpow.pop %v3445
        %v3447 = vmul.f32 %v3429, 1.442695
        %v3448 = vpow.pop %v3447
        %v3449 = vmul.f32 %v3430, 1.442695
        %v3450 = vpow.pop %v3449
        %v3451 = vmul.f32 %v3431, 1.442695
        %v3452 = vpow.pop %v3451
        %v3453 = vmul.f32 %v3432, 1.442695
        %v3454 = vpow.pop %v3453
        %v3455 = vmul.f32 %v3433, 1.442695
        %v3456 = vpow.pop %v3455
        %v3457 = vmul.f32 %v3434, 1.442695
        %v3458 = vpow.pop %v3457
        %v3459 = vmul.f32 %v3435, 1.442695
        %v3460 = vpow.pop %v3459
        %v3461 = vmul.f32 %v3436, 1.442695
        %v3462 = vpow.pop %v3461
        %v3463 = vmul.f32 %v3437, 1.442695
        %v3464 = vpow.pop %v3463
        %v3465 = vmul.f32 %v3438, 1.442695
        %v3466 = vpow.pop %v3465
        %v3467 = vmul.f32 %v3439, 1.442695
        %v3468 = vpow.pop %v3467
        %v3469 = vmul.f32 %v3440, 1.442695
        %v3470 = vpow.pop %v3469
        %v3471 = vmul.f32 %v3441, 1.442695
        %v3472 = vpow.pop %v3471
        %v3473 = vmul.f32 %v3442, 1.442695
        %v3474 = vpow.pop %v3473
        %v3475 = vadd.f32 %v3444, 1.0
        %v3476 = vadd.f32 %v3446, 1.0
        %v3477 = vadd.f32 %v3448, 1.0
        %v3478 = vadd.f32 %v3450, 1.0
        %v3479 = vadd.f32 %v3452, 1.0
        %v3480 = vadd.f32 %v3454, 1.0
        %v3481 = vadd.f32 %v3456, 1.0
        %v3482 = vadd.f32 %v3458, 1.0
        %v3483 = vadd.f32 %v3460, 1.0
        %v3484 = vadd.f32 %v3462, 1.0
        %v3485 = vadd.f32 %v3464, 1.0
        %v3486 = vadd.f32 %v3466, 1.0
        %v3487 = vadd.f32 %v3468, 1.0
        %v3488 = vadd.f32 %v3470, 1.0
        %v3489 = vadd.f32 %v3472, 1.0
        %v3490 = vadd.f32 %v3474, 1.0
        %v3491 = vrcp.pop %v3475
        %v3492 = vmul.f32 1.0, %v3491
        %v3493 = vrcp.pop %v3476
        %v3494 = vmul.f32 1.0, %v3493
        %v3495 = vrcp.pop %v3477
        %v3496 = vmul.f32 1.0, %v3495
        %v3497 = vrcp.pop %v3478
        %v3498 = vmul.f32 1.0, %v3497
        %v3499 = vrcp.pop %v3479
        %v3500 = vmul.f32 1.0, %v3499
        %v3501 = vrcp.pop %v3480
        %v3502 = vmul.f32 1.0, %v3501
        %v3503 = vrcp.pop %v3481
        %v3504 = vmul.f32 1.0, %v3503
        %v3505 = vrcp.pop %v3482
        %v3506 = vmul.f32 1.0, %v3505
        %v3507 = vrcp.pop %v3483
        %v3508 = vmul.f32 1.0, %v3507
        %v3509 = vrcp.pop %v3484
        %v3510 = vmul.f32 1.0, %v3509
        %v3511 = vrcp.pop %v3485
        %v3512 = vmul.f32 1.0, %v3511
        %v3513 = vrcp.pop %v3486
        %v3514 = vmul.f32 1.0, %v3513
        %v3515 = vrcp.pop %v3487
        %v3516 = vmul.f32 1.0, %v3515
        %v3517 = vrcp.pop %v3488
        %v3518 = vmul.f32 1.0, %v3517
        %v3519 = vrcp.pop %v3489
        %v3520 = vmul.f32 1.0, %v3519
        %v3521 = vrcp.pop %v3490
        %v3522 = vmul.f32 1.0, %v3521
        %3523 = vst [vmem:[%s352] sm:$0xff] %v3492
        %3524 = vst [vmem:[%s352 + $0x8] sm:$0xff] %v3494
        %3525 = vst [vmem:[%s352 + $0x10] sm:$0xff] %v3496
        %3526 = vst [vmem:[%s352 + $0x18] sm:$0xff] %v3498
        %3527 = vst [vmem:[%s352 + $0x20] sm:$0xff] %v3500
        %3528 = vst [vmem:[%s352 + $0x28] sm:$0xff] %v3502
        %3529 = vst [vmem:[%s352 + $0x30] sm:$0xff] %v3504
        %3530 = vst [vmem:[%s352 + $0x38] sm:$0xff] %v3506
        %3531 = vst [vmem:[%s352 + $0x40] sm:$0xff] %v3508
        %3532 = vst [vmem:[%s352 + $0x48] sm:$0xff] %v3510
        %3533 = vst [vmem:[%s352 + $0x50] sm:$0xff] %v3512
        %3534 = vst [vmem:[%s352 + $0x58] sm:$0xff] %v3514
        %3535 = vst [vmem:[%s352 + $0x60] sm:$0xff] %v3516
        %3536 = vst [vmem:[%s352 + $0x68] sm:$0xff] %v3518
        %3537 = vst [vmem:[%s352 + $0x70] sm:$0xff] %v3520
        %3538 = vst [vmem:[%s352 + $0x78] sm:$0xff] %v3522
        %s3539 = sand.u32 %s186, 1
        %s3540 = scalar_lea.sflag [#allocation4], %s3539
        %s3541 = sand.u32 %s186, 1
        %s3542 = smul.addr %s3541, 128
        %s3543 = scalar_lea.vmem [#allocation11], %s3542
        // Predicated region
        $region69: #{tpu_custom_call.1} parent=47 // pred_check
          %p3544 = pneg %p196
        $region70: #{tpu_custom_call.1} parent=47 // pred_check_branch
          %3546 = sbr.rel (%p3544) target = $region72
        $region71: #{tpu_custom_call.1} parent=47 // pred_region
          %s3547 = smul.u32 2, %s26
          %s3549 = ssub.s32 2048, 2048
          %3550 = vsyncadd %s3540, %s3549
          %s3551 = smul.addr %s3547, 8
          %s3552 = smul.addr %s3551, 128
          %s3553 = scalar_lea.hbm %s7, %s3552
          %s3554 = sshll.u32 %s3543, 4
          %s3555 = int_to_ptr.vmem [resolvable:$true] %s3554
          %3560 = dma.vmem_to_hbm [thread:$0]  %s3555, 2048, %s3553, %s3540, 1024, 1024, 64
        $region72: #{tpu_custom_call.1} parent=47 // pred_fallthru
          _
      $region48: #{tpu_custom_call.1} parent=5 // pred_fallthru
        _
      %p3561 = scmp.le.s32.totalorder 2, %s21
      // Predicated region
      $region73: #{tpu_custom_call.1} parent=5 // pred_check
        %p3562 = pneg %p3561
      $region74: #{tpu_custom_call.1} parent=5 // pred_check_branch
        %3564 = sbr.rel (%p3562) target = $region76
      $region75: #{tpu_custom_call.1} parent=5 // pred_region
        %s3565 = ssub.s32 %s21, 2
        // Predicated region
        $region77: #{tpu_custom_call.1} parent=75 // pred_check
          %p3566 = pneg %p202
        $region78: #{tpu_custom_call.1} parent=75 // pred_check_branch
          %3568 = sbr.rel (%p3566) target = $region80
        $region79: #{tpu_custom_call.1} parent=75 // pred_region
          %s3569 = sand.u32 %s187, 1
          %s3570 = scalar_lea.sflag [#allocation4], %s3569
          %s3571 = sand.u32 %s187, 1
          %s3572 = smul.addr %s3571, 128
          %s3573 = scalar_lea.vmem [#allocation11], %s3572
          %3574 = dma.done %s3570, 2048
        $region80: #{tpu_custom_call.1} parent=75 // pred_fallthru
          _
      $region76: #{tpu_custom_call.1} parent=5 // pred_fallthru
        _
    $region6: #{tpu_custom_call.1} parent=1 // loop_footer
      %s25 = sadd.s32 1, %s21
    $region7: #{tpu_custom_call.1} parent=1 // loop_footer_branch
      %20 = sbr.rel target = $region3
    $region8: #{tpu_custom_call.1} parent=1 // loop_exit
      _
    %3575 = vsyncpa [#allocation3], 1
    %s3576 = scalar_lea.sflag [#allocation3], 1
    %3577 = vsyncpa %s3576, 1
    %3578 = vsyncpa [#allocation6], 1
    %3579 = vsyncpa [#allocation9], 1
    %3580 = vsyncpa [#allocation4], 1
    %s3581 = scalar_lea.sflag [#allocation4], 1
    %3582 = vsyncpa %s3581, 1

</llo_original>
